<compile_context>
chip_gen: v6e
topology: v6e:2x2x1
jax: 0.10.0
libtpu: 0.0.40
codegen_flags: <defaults>
</compile_context>

<pallas_src>
import math

import jax
import jax.numpy as jnp
from jax.experimental import pallas as pl
from jax.experimental.pallas import tpu as pltpu

# OGB atom feature dims (get_atom_feature_dims()).
FULL_ATOM_FEATURE_DIMS = [119, 5, 12, 12, 10, 6, 6, 2, 2]
NUM_FEATURES = len(FULL_ATOM_FEATURE_DIMS)

HALF = 128                      # one 128-lane vocab half
TOTAL_PAD = 2 * HALF            # fused-table rows (256)

HALF0_FEATS = (0, 1)                     # 119 + 5 = 124 rows -> rows [0, 128)
HALF1_FEATS = (2, 3, 4, 5, 6, 7, 8)      # 50 rows            -> rows [128, 256)


def _fused_offsets():
    offs = [0] * NUM_FEATURES
    o = 0
    for f in HALF0_FEATS:
        offs[f] = o
        o += FULL_ATOM_FEATURE_DIMS[f]
    assert o <= HALF
    o = HALF
    for f in HALF1_FEATS:
        offs[f] = o
        o += FULL_ATOM_FEATURE_DIMS[f]
    assert o <= TOTAL_PAD
    return tuple(offs)


FUSED_OFFSETS = _fused_offsets()


def _atom_encoder_kernel(x_ref, hi_ref, lo_ref, o_ref):
    # x_ref:  (TN, 9)            int32 raw feature indices (offsets folded here)
    # hi_ref: (TOTAL_PAD, EP)    bfloat16 fused table, high bf16 part
    # lo_ref: (TOTAL_PAD, EP)    bfloat16 fused table, low (residual) bf16 part
    # o_ref:  (TN, EP)           float32
    tn = x_ref.shape[0]
    x = x_ref[...]
    col = jax.lax.broadcasted_iota(jnp.int32, (tn, HALF), 1)   # lanes 0..127

    def half_mask(feats, base):
        # Per-feature one-hots are disjoint -> OR-accumulate bools, cast once.
        # (col - offset) == idx : the offset constant-folds into the iota.
        m = None
        for f in feats:
            cmp = (col - (FUSED_OFFSETS[f] - base)) == x[:, f][:, None]
            m = cmp if m is None else (m | cmp)
        return m

    # multi-hot is exactly 0/1 -> bf16 cast is lossless; keep mask math in
    # bool/int32 (v5e has no bf16 VALU) and only cast at the dots.
    m0 = half_mask(HALF0_FEATS, 0).astype(jnp.bfloat16)     # (TN, 128)
    m1 = half_mask(HALF1_FEATS, HALF).astype(jnp.bfloat16)  # (TN, 128)

    # Sum of 9 lookups == multi_hot @ fused_table.  Four bf16 MXU passes
    # (K=128), f32 accumulation; hi/lo split keeps ~f32-level accuracy.
    acc = jnp.dot(m0, hi_ref[:HALF, :], preferred_element_type=jnp.float32)
    acc += jnp.dot(m1, hi_ref[HALF:, :], preferred_element_type=jnp.float32)
    acc += jnp.dot(m0, lo_ref[:HALF, :], preferred_element_type=jnp.float32)
    acc += jnp.dot(m1, lo_ref[HALF:, :], preferred_element_type=jnp.float32)
    o_ref[...] = acc


def fuse_atom_tables(tables):
    """One-time parameter prep: pack per-feature tables into the fused layout
    and split into bf16 hi/lo halves.  Call once at init, NOT per forward."""
    emb_dim = tables[0].shape[1]
    e_pad = ((emb_dim + 127) // 128) * 128        # lane-dense output stores
    fused = jnp.zeros((TOTAL_PAD, e_pad), jnp.float32)
    for i, t in enumerate(tables):
        off = FUSED_OFFSETS[i]
        fused = fused.at[off:off + t.shape[0], :emb_dim].set(t.astype(jnp.float32))
    tab_hi = fused.astype(jnp.bfloat16)
    tab_lo = (fused - tab_hi.astype(jnp.float32)).astype(jnp.bfloat16)
    return tab_hi, tab_lo, emb_dim


def atom_encoder_pallas(x_idx, tab_hi, tab_lo, emb_dim, *, tile_n=1024):
    """x_idx: (N, 9) int feature indices; tab_hi/tab_lo from fuse_atom_tables."""
    n, f = x_idx.shape
    assert f == NUM_FEATURES
    assert tile_n % 128 == 0 and tile_n > 0
    e_pad = tab_hi.shape[1]

    # v7x shards the "parallel" axis over 2 TensorCores: keep >= 2 grid steps,
    # and prefer an even step count so neither core idles on the tail.
    while tile_n > 128 and -(-n // tile_n) < 2:
        tile_n //= 2
    steps = -(-n // tile_n)
    if tile_n > 128 and steps > 1 and steps % 2 == 1:
        tile_n //= 2

    n_pad = ((n + tile_n - 1) // tile_n) * tile_n
    x32 = x_idx.astype(jnp.int32)
    if n_pad != n:                # padded rows produce garbage, sliced off below
        x32 = jnp.pad(x32, ((0, n_pad - n), (0, 0)))

    cost = pl.CostEstimate(
        flops=4 * 2 * n_pad * HALF * e_pad,                     # 4 K=128 dots
        transcendentals=0,
        bytes_accessed=n_pad * (4 * NUM_FEATURES + 4 * e_pad)   # x + out
        + 2 * TOTAL_PAD * e_pad * 2,                            # bf16 tables
    )

    out = pl.pallas_call(
        _atom_encoder_kernel,
        out_shape=jax.ShapeDtypeStruct((n_pad, e_pad), jnp.float32),
        grid_spec=pltpu.PrefetchScalarGridSpec(
            num_scalar_prefetch=0,
            grid=(n_pad // tile_n,),
            in_specs=[
                pl.BlockSpec((tile_n, NUM_FEATURES), lambda i: (i, 0)),
                # Constant index_map: tiny table blocks stay resident across
                # grid steps instead of being re-fetched.
                pl.BlockSpec((TOTAL_PAD, e_pad), lambda i: (0, 0)),
                pl.BlockSpec((TOTAL_PAD, e_pad), lambda i: (0, 0)),
            ],
            out_specs=pl.BlockSpec((tile_n, e_pad), lambda i: (i, 0)),
        ),
        compiler_params=pltpu.CompilerParams(
            dimension_semantics=("parallel",)),
        cost_estimate=cost,
    )(x32, tab_hi, tab_lo)

    return out[:n, :emb_dim]


def init_atom_encoder_params(key, emb_dim):
    """Xavier-uniform init per embedding table (same as the PyTorch module)."""
    keys = jax.random.split(key, NUM_FEATURES)
    tables = []
    for k, dim in zip(keys, FULL_ATOM_FEATURE_DIMS):
        bound = math.sqrt(6.0 / (dim + emb_dim))
        tables.append(jax.random.uniform(
            k, (dim, emb_dim), jnp.float32, minval=-bound, maxval=bound))
    return tables


def atom_encoder_ref(x_idx, tables):
    """Pure-JAX reference (same semantics as the PyTorch forward)."""
    out = 0
    for i, t in enumerate(tables):
        out = out + t[x_idx[:, i]]
    return out


if __name__ == "__main__":
    key = jax.random.PRNGKey(0)
    k_tab, k_x = jax.random.split(key)

    emb_dim = 100      # not a lane multiple -> exercises the E-padding path
    num_atoms = 300    # not a tile multiple -> exercises the N-padding path

    tables = init_atom_encoder_params(k_tab, emb_dim)
    tab_hi, tab_lo, emb_dim = fuse_atom_tables(tables)   # one-time prep

    # Deterministic input: valid indices per feature column.
    xkeys = jax.random.split(k_x, NUM_FEATURES)
    cols = [jax.random.randint(kk, (num_atoms, 1), 0, dim, jnp.int32)
            for kk, dim in zip(xkeys, FULL_ATOM_FEATURE_DIMS)]
    x = jnp.concatenate(cols, axis=1)              # (300, 9) int32

    out = atom_encoder_pallas(x, tab_hi, tab_lo, emb_dim)
    out = jax.block_until_ready(out)

    ref = atom_encoder_ref(x, tables)
    assert out.shape == (num_atoms, emb_dim)
    # bf16 hi/lo table split: worst-case absolute error < 3.5e-5 for these
    # Xavier-scale tables (9 lookups x 2^-16 relative residual each).
    assert jnp.allclose(out, ref, atol=5e-5, rtol=1e-5), float(
        jnp.max(jnp.abs(out - ref)))

    print("KERNEL_OK")
</pallas_src>

<mosaic_0001>
module attributes {stable_mosaic.version = 11 : i64} {
  func.func @_atom_encoder_kernel(%arg0: i32, %arg1: memref<256x9xi32, #tpu.memory_space<vmem>>, %arg2: memref<256x128xbf16, #tpu.memory_space<vmem>>, %arg3: memref<256x128xbf16, #tpu.memory_space<vmem>>, %arg4: memref<256x128xf32, #tpu.memory_space<vmem>>) attributes {dimension_semantics = [#tpu.dimension_semantics<parallel>], iteration_bounds = array<i64: 2>, scalar_prefetch = 0 : i64, scratch_operands = 0 : i64, tpu.core_type = #tpu.core_type<tc>, window_params = [{transform_indices = @transform_0, window_bounds = array<i64: 256, 9>}, {pipeline_mode = #tpu.pipeline_mode<synchronous>, transform_indices = @transform_1, window_bounds = array<i64: 256, 128>}, {pipeline_mode = #tpu.pipeline_mode<synchronous>, transform_indices = @transform_2, window_bounds = array<i64: 256, 128>}, {transform_indices = @transform_3, window_bounds = array<i64: 256, 128>}]} {
    %c0 = arith.constant 0 : index
    %c0_0 = arith.constant 0 : index
    %0 = vector.load %arg1[%c0, %c0_0] : memref<256x9xi32, #tpu.memory_space<vmem>>, vector<256x9xi32>
    %1 = tpu.iota {dimensions = array<i32: 1>} : vector<256x128xi32>
    %c0_i32 = arith.constant 0 : i32
    %2 = vector.broadcast %c0_i32 : i32 to vector<256x128xi32>
    %3 = arith.subi %1, %2 : vector<256x128xi32>
    %4 = vector.extract_strided_slice %0 {offsets = [0, 0], sizes = [256, 1], strides = [1, 1]} : vector<256x9xi32> to vector<256x1xi32>
    %5 = vector.shape_cast %4 : vector<256x1xi32> to vector<256xi32>
    %6 = vector.shape_cast %5 : vector<256xi32> to vector<256x1xi32>
    %7 = vector.broadcast %6 : vector<256x1xi32> to vector<256x128xi32>
    %8 = arith.cmpi eq, %3, %7 : vector<256x128xi32>
    %c119_i32 = arith.constant 119 : i32
    %9 = vector.broadcast %c119_i32 : i32 to vector<256x128xi32>
    %10 = arith.subi %1, %9 : vector<256x128xi32>
    %11 = vector.extract_strided_slice %0 {offsets = [0, 1], sizes = [256, 1], strides = [1, 1]} : vector<256x9xi32> to vector<256x1xi32>
    %12 = vector.shape_cast %11 : vector<256x1xi32> to vector<256xi32>
    %13 = vector.shape_cast %12 : vector<256xi32> to vector<256x1xi32>
    %14 = vector.broadcast %13 : vector<256x1xi32> to vector<256x128xi32>
    %15 = arith.cmpi eq, %10, %14 : vector<256x128xi32>
    %16 = arith.ori %8, %15 : vector<256x128xi1>
    %17 = arith.extui %16 : vector<256x128xi1> to vector<256x128xi32>
    %18 = arith.sitofp %17 : vector<256x128xi32> to vector<256x128xf32>
    %19 = arith.truncf %18 : vector<256x128xf32> to vector<256x128xbf16>
    %c0_i32_1 = arith.constant 0 : i32
    %20 = vector.broadcast %c0_i32_1 : i32 to vector<256x128xi32>
    %21 = arith.subi %1, %20 : vector<256x128xi32>
    %22 = vector.extract_strided_slice %0 {offsets = [0, 2], sizes = [256, 1], strides = [1, 1]} : vector<256x9xi32> to vector<256x1xi32>
    %23 = vector.shape_cast %22 : vector<256x1xi32> to vector<256xi32>
    %24 = vector.shape_cast %23 : vector<256xi32> to vector<256x1xi32>
    %25 = vector.broadcast %24 : vector<256x1xi32> to vector<256x128xi32>
    %26 = arith.cmpi eq, %21, %25 : vector<256x128xi32>
    %c12_i32 = arith.constant 12 : i32
    %27 = vector.broadcast %c12_i32 : i32 to vector<256x128xi32>
    %28 = arith.subi %1, %27 : vector<256x128xi32>
    %29 = vector.extract_strided_slice %0 {offsets = [0, 3], sizes = [256, 1], strides = [1, 1]} : vector<256x9xi32> to vector<256x1xi32>
    %30 = vector.shape_cast %29 : vector<256x1xi32> to vector<256xi32>
    %31 = vector.shape_cast %30 : vector<256xi32> to vector<256x1xi32>
    %32 = vector.broadcast %31 : vector<256x1xi32> to vector<256x128xi32>
    %33 = arith.cmpi eq, %28, %32 : vector<256x128xi32>
    %34 = arith.ori %26, %33 : vector<256x128xi1>
    %c24_i32 = arith.constant 24 : i32
    %35 = vector.broadcast %c24_i32 : i32 to vector<256x128xi32>
    %36 = arith.subi %1, %35 : vector<256x128xi32>
    %37 = vector.extract_strided_slice %0 {offsets = [0, 4], sizes = [256, 1], strides = [1, 1]} : vector<256x9xi32> to vector<256x1xi32>
    %38 = vector.shape_cast %37 : vector<256x1xi32> to vector<256xi32>
    %39 = vector.shape_cast %38 : vector<256xi32> to vector<256x1xi32>
    %40 = vector.broadcast %39 : vector<256x1xi32> to vector<256x128xi32>
    %41 = arith.cmpi eq, %36, %40 : vector<256x128xi32>
    %42 = arith.ori %34, %41 : vector<256x128xi1>
    %c34_i32 = arith.constant 34 : i32
    %43 = vector.broadcast %c34_i32 : i32 to vector<256x128xi32>
    %44 = arith.subi %1, %43 : vector<256x128xi32>
    %45 = vector.extract_strided_slice %0 {offsets = [0, 5], sizes = [256, 1], strides = [1, 1]} : vector<256x9xi32> to vector<256x1xi32>
    %46 = vector.shape_cast %45 : vector<256x1xi32> to vector<256xi32>
    %47 = vector.shape_cast %46 : vector<256xi32> to vector<256x1xi32>
    %48 = vector.broadcast %47 : vector<256x1xi32> to vector<256x128xi32>
    %49 = arith.cmpi eq, %44, %48 : vector<256x128xi32>
    %50 = arith.ori %42, %49 : vector<256x128xi1>
    %c40_i32 = arith.constant 40 : i32
    %51 = vector.broadcast %c40_i32 : i32 to vector<256x128xi32>
    %52 = arith.subi %1, %51 : vector<256x128xi32>
    %53 = vector.extract_strided_slice %0 {offsets = [0, 6], sizes = [256, 1], strides = [1, 1]} : vector<256x9xi32> to vector<256x1xi32>
    %54 = vector.shape_cast %53 : vector<256x1xi32> to vector<256xi32>
    %55 = vector.shape_cast %54 : vector<256xi32> to vector<256x1xi32>
    %56 = vector.broadcast %55 : vector<256x1xi32> to vector<256x128xi32>
    %57 = arith.cmpi eq, %52, %56 : vector<256x128xi32>
    %58 = arith.ori %50, %57 : vector<256x128xi1>
    %c46_i32 = arith.constant 46 : i32
    %59 = vector.broadcast %c46_i32 : i32 to vector<256x128xi32>
    %60 = arith.subi %1, %59 : vector<256x128xi32>
    %61 = vector.extract_strided_slice %0 {offsets = [0, 7], sizes = [256, 1], strides = [1, 1]} : vector<256x9xi32> to vector<256x1xi32>
    %62 = vector.shape_cast %61 : vector<256x1xi32> to vector<256xi32>
    %63 = vector.shape_cast %62 : vector<256xi32> to vector<256x1xi32>
    %64 = vector.broadcast %63 : vector<256x1xi32> to vector<256x128xi32>
    %65 = arith.cmpi eq, %60, %64 : vector<256x128xi32>
    %66 = arith.ori %58, %65 : vector<256x128xi1>
    %c48_i32 = arith.constant 48 : i32
    %67 = vector.broadcast %c48_i32 : i32 to vector<256x128xi32>
    %68 = arith.subi %1, %67 : vector<256x128xi32>
    %69 = vector.extract_strided_slice %0 {offsets = [0, 8], sizes = [256, 1], strides = [1, 1]} : vector<256x9xi32> to vector<256x1xi32>
    %70 = vector.shape_cast %69 : vector<256x1xi32> to vector<256xi32>
    %71 = vector.shape_cast %70 : vector<256xi32> to vector<256x1xi32>
    %72 = vector.broadcast %71 : vector<256x1xi32> to vector<256x128xi32>
    %73 = arith.cmpi eq, %68, %72 : vector<256x128xi32>
    %74 = arith.ori %66, %73 : vector<256x128xi1>
    %75 = arith.extui %74 : vector<256x128xi1> to vector<256x128xi32>
    %76 = arith.sitofp %75 : vector<256x128xi32> to vector<256x128xf32>
    %77 = arith.truncf %76 : vector<256x128xf32> to vector<256x128xbf16>
    %c0_2 = arith.constant 0 : index
    %c0_3 = arith.constant 0 : index
    %78 = vector.load %arg2[%c0_2, %c0_3] : memref<256x128xbf16, #tpu.memory_space<vmem>>, vector<128x128xbf16>
    %cst = arith.constant dense<0.000000e+00> : vector<256x128xf32>
    %79 = tpu.matmul %19, %78, %cst {dimension_numbers = #tpu.dot_dimension_numbers<[1], [0], [0], [1], [0, 0, 1, 1], [], []>} : vector<256x128xbf16>, vector<128x128xbf16>, vector<256x128xf32> -> vector<256x128xf32>
    %c128 = arith.constant 128 : index
    %c0_4 = arith.constant 0 : index
    %80 = vector.load %arg2[%c128, %c0_4] : memref<256x128xbf16, #tpu.memory_space<vmem>>, vector<128x128xbf16>
    %cst_5 = arith.constant dense<0.000000e+00> : vector<256x128xf32>
    %81 = tpu.matmul %77, %80, %cst_5 {dimension_numbers = #tpu.dot_dimension_numbers<[1], [0], [0], [1], [0, 0, 1, 1], [], []>} : vector<256x128xbf16>, vector<128x128xbf16>, vector<256x128xf32> -> vector<256x128xf32>
    %82 = arith.addf %79, %81 : vector<256x128xf32>
    %c0_6 = arith.constant 0 : index
    %c0_7 = arith.constant 0 : index
    %83 = vector.load %arg3[%c0_6, %c0_7] : memref<256x128xbf16, #tpu.memory_space<vmem>>, vector<128x128xbf16>
    %cst_8 = arith.constant dense<0.000000e+00> : vector<256x128xf32>
    %84 = tpu.matmul %19, %83, %cst_8 {dimension_numbers = #tpu.dot_dimension_numbers<[1], [0], [0], [1], [0, 0, 1, 1], [], []>} : vector<256x128xbf16>, vector<128x128xbf16>, vector<256x128xf32> -> vector<256x128xf32>
    %85 = arith.addf %82, %84 : vector<256x128xf32>
    %c128_9 = arith.constant 128 : index
    %c0_10 = arith.constant 0 : index
    %86 = vector.load %arg3[%c128_9, %c0_10] : memref<256x128xbf16, #tpu.memory_space<vmem>>, vector<128x128xbf16>
    %cst_11 = arith.constant dense<0.000000e+00> : vector<256x128xf32>
    %87 = tpu.matmul %77, %86, %cst_11 {dimension_numbers = #tpu.dot_dimension_numbers<[1], [0], [0], [1], [0, 0, 1, 1], [], []>} : vector<256x128xbf16>, vector<128x128xbf16>, vector<256x128xf32> -> vector<256x128xf32>
    %88 = arith.addf %85, %87 : vector<256x128xf32>
    %c0_12 = arith.constant 0 : index
    %c0_13 = arith.constant 0 : index
    %89 = vector.load %arg4[%c0_12, %c0_13] : memref<256x128xf32, #tpu.memory_space<vmem>>, vector<256x128xf32>
    tpu.vector_store %arg4[%c0_12, %c0_13], %88 {strides = array<i32>} : memref<256x128xf32, #tpu.memory_space<vmem>>, vector<256x128xf32>,
    return
  }
  func.func @transform_0(%arg0: i32) -> (i32, i32) {
    %c0_i32 = arith.constant 0 : i32
    %c0_i32_0 = arith.constant 0 : i32
    return %arg0, %c0_i32 : i32, i32
  }
  func.func @transform_1(%arg0: i32) -> (i32, i32) {
    %c0_i32 = arith.constant 0 : i32
    %c0_i32_0 = arith.constant 0 : i32
    %c0_i32_1 = arith.constant 0 : i32
    return %c0_i32, %c0_i32_0 : i32, i32
  }
  func.func @transform_2(%arg0: i32) -> (i32, i32) {
    %c0_i32 = arith.constant 0 : i32
    %c0_i32_0 = arith.constant 0 : i32
    %c0_i32_1 = arith.constant 0 : i32
    return %c0_i32, %c0_i32_0 : i32, i32
  }
  func.func @transform_3(%arg0: i32) -> (i32, i32) {
    %c0_i32 = arith.constant 0 : i32
    %c0_i32_0 = arith.constant 0 : i32
    return %arg0, %c0_i32 : i32, i32
  }
}

</mosaic_0001>

<llo_original>
// kernel: tpu_custom_call.1
$region0: #{tpu_custom_call.1}
  #allocation0 [shape = 'u32[]', space=smem, size = 0x4, offset = 0x4, fixed_abs, tag = 'smem constant byte address 0x4 - core index']
  #allocation1 [shape = 'u32[144,128]{1,0:T(1,128)}', space=vmem, size = 0x12000, scoped, tag = 'internal scratch']
  %s0 = inlined_call_operand.vmem [shape: s32[512,9], index: 0, kind: input, shape index: {}]
  %s1 = inlined_call_operand.vmem [shape: bf16[256,128], index: 1, kind: input, shape index: {}]
  %s2 = inlined_call_operand.vmem [shape: bf16[256,128], index: 2, kind: input, shape index: {}]
  %s3 = inlined_call_operand.hbm [shape: f32[512,128], index: 3, kind: output, shape index: {}]
  %s4 = sld [smem:[#allocation0]]
  $region45: #{tpu_custom_call.1} parent=0
    _
  %s6 = ssub.s32 1, %s4
  %s7 = scalar_select 0, %s6, %s4
  $region1: #{tpu_custom_call.1} parent=0
    #allocation2 [shape = 'u8[262144]{0}', space=vmem, size = 0x40000, scoped, tag = 'output window, operand 0']
    #allocation3 [shape = 's32[2]{0}', space=sflag, size = 0x8, scoped, tag = 'scoped memory for tpu_custom_call.1']
    %8 = vsyncpa [#allocation3], 0
    %s9 = scalar_lea.sflag [#allocation3], 1
    %10 = vsyncpa %s9, 0
    loop: start=0, step=1, limit=4
    $region2: #{tpu_custom_call.1} parent=1 // loop_pre_header
      _
    $region3: #{tpu_custom_call.1} parent=1 // loop_header
      %s12 = sphi 0, %s16
      %p13 = scmp.ge.s32.totalorder %s12, 4
      %s22 = sphi 0, %s24
      %s25 = sphi 0, %s22
      %s26 = sphi 0, %s25
      %s42 = sphi 0, %s26
      %s46 = sphi 0, %s46
      %s48 = sphi 0, %s46
      %s49 = sphi 0, %s48
      %s63 = sphi 0, %s49
      %s67 = sphi 0, %s67
      %s69 = sphi 0, %s67
      %s70 = sphi 0, %s69
      %s84 = sphi 0, %s70
      %s90 = sphi 0, %s92
      %s93 = sphi 0, %s90
      %s94 = sphi 0, %s93
      %s110 = sphi 0, %s94
    $region4: #{tpu_custom_call.1} parent=1 // loop_header_branch
      %15 = sbr.rel (%p13) target = $region8
    $region5: #{tpu_custom_call.1} parent=1 // loop_body
      %s17 = ssub.s32 %s12, 1
      %s18 = ssub.s32 %s12, 2
      %s19 = sadd.s32 %s12, 1
      %s20 = ssub.s32 %s12, %s19
      %p21 = scmp.eq.s32.totalorder %s20, 0
      %s23 = sadd.s32 %s22, 1
      %s24 = scalar_select %p21, %s22, %s23
      %p27 = pneg %p21
      %p28 = scmp.eq.s32.totalorder %s12, 1
      %p29 = por %p27, %p28
      %p30 = scmp.ne.s32.totalorder %s22, %s25
      %p31 = scmp.eq.s32.totalorder %s12, 0
      %p32 = por %p30, %p31
      %p33 = scmp.ne.s32.totalorder %s22, %s25
      %p34 = scmp.eq.s32.totalorder %s17, 1
      %p35 = por %p33, %p34
      %p36 = scmp.ne.s32.totalorder %s25, %s26
      %p37 = scmp.eq.s32.totalorder %s17, 0
      %p38 = por %p36, %p37
      %p39 = scmp.ne.s32.totalorder %s25, %s26
      %p40 = scmp.eq.s32.totalorder %s18, 1
      %p41 = por %p39, %p40
      %p43 = scmp.ne.s32.totalorder %s26, %s42
      %p44 = scmp.eq.s32.totalorder %s18, 0
      %p45 = por %p43, %p44
      %s47 = sadd.s32 %s46, 1
      %p50 = scmp.eq.s32.totalorder %s12, 1
      %p51 = scmp.ne.s32.totalorder %s46, %s48
      %p52 = scmp.eq.s32.totalorder %s12, 0
      %p53 = por %p51, %p52
      %p54 = scmp.ne.s32.totalorder %s46, %s48
      %p55 = scmp.eq.s32.totalorder %s17, 1
      %p56 = por %p54, %p55
      %p57 = scmp.ne.s32.totalorder %s48, %s49
      %p58 = scmp.eq.s32.totalorder %s17, 0
      %p59 = por %p57, %p58
      %p60 = scmp.ne.s32.totalorder %s48, %s49
      %p61 = scmp.eq.s32.totalorder %s18, 1
      %p62 = por %p60, %p61
      %p64 = scmp.ne.s32.totalorder %s49, %s63
      %p65 = scmp.eq.s32.totalorder %s18, 0
      %p66 = por %p64, %p65
      %s68 = sadd.s32 %s67, 1
      %p71 = scmp.eq.s32.totalorder %s12, 1
      %p72 = scmp.ne.s32.totalorder %s67, %s69
      %p73 = scmp.eq.s32.totalorder %s12, 0
      %p74 = por %p72, %p73
      %p75 = scmp.ne.s32.totalorder %s67, %s69
      %p76 = scmp.eq.s32.totalorder %s17, 1
      %p77 = por %p75, %p76
      %p78 = scmp.ne.s32.totalorder %s69, %s70
      %p79 = scmp.eq.s32.totalorder %s17, 0
      %p80 = por %p78, %p79
      %p81 = scmp.ne.s32.totalorder %s69, %s70
      %p82 = scmp.eq.s32.totalorder %s18, 1
      %p83 = por %p81, %p82
      %p85 = scmp.ne.s32.totalorder %s70, %s84
      %p86 = scmp.eq.s32.totalorder %s18, 0
      %p87 = por %p85, %p86
      %s88 = ssub.s32 %s12, %s19
      %p89 = scmp.eq.s32.totalorder %s88, 0
      %s91 = sadd.s32 %s90, 1
      %s92 = scalar_select %p89, %s90, %s91
      %p95 = pneg %p89
      %p96 = scmp.eq.s32.totalorder %s12, 1
      %p97 = por %p95, %p96
      %p98 = scmp.ne.s32.totalorder %s90, %s93
      %p99 = scmp.eq.s32.totalorder %s12, 0
      %p100 = por %p98, %p99
      %p101 = scmp.ne.s32.totalorder %s90, %s93
      %p102 = scmp.eq.s32.totalorder %s17, 1
      %p103 = por %p101, %p102
      %p104 = scmp.ne.s32.totalorder %s93, %s94
      %p105 = scmp.eq.s32.totalorder %s17, 0
      %p106 = por %p104, %p105
      %p107 = scmp.ne.s32.totalorder %s93, %s94
      %p108 = scmp.eq.s32.totalorder %s18, 1
      %p109 = por %p107, %p108
      %p111 = scmp.ne.s32.totalorder %s94, %s110
      %p112 = scmp.eq.s32.totalorder %s18, 0
      %p113 = por %p111, %p112
      %p114 = scmp.le.s32.totalorder 1, %s12
      %p115 = scmp.lt.s32.totalorder %s12, 3
      %p116 = pnand %p114, %p115
      %p117 = pneg %p116
      // Predicated region
      $region9: #{tpu_custom_call.1} parent=5 // pred_check
        _
      $region10: #{tpu_custom_call.1} parent=5 // pred_check_branch
        %119 = sbr.rel (%p116) target = $region12
      $region11: #{tpu_custom_call.1} parent=5 // pred_region
        %s120 = ssub.s32 %s12, 1
        // Predicated region
        $region13: #{tpu_custom_call.1} parent=11 // pred_check
          %p121 = pneg %p59
        $region14: #{tpu_custom_call.1} parent=11 // pred_check_branch
          %123 = sbr.rel (%p121) target = $region16
        $region15: #{tpu_custom_call.1} parent=11 // pred_region
          _
        $region16: #{tpu_custom_call.1} parent=11 // pred_fallthru
          _
        // Predicated region
        $region17: #{tpu_custom_call.1} parent=11 // pred_check
          %p124 = pneg %p80
        $region18: #{tpu_custom_call.1} parent=11 // pred_check_branch
          %126 = sbr.rel (%p124) target = $region20
        $region19: #{tpu_custom_call.1} parent=11 // pred_region
          _
        $region20: #{tpu_custom_call.1} parent=11 // pred_fallthru
          _
      $region12: #{tpu_custom_call.1} parent=5 // pred_fallthru
        _
      %p127 = scmp.lt.s32.totalorder %s12, 2
      // Predicated region
      $region21: #{tpu_custom_call.1} parent=5 // pred_check
        %p128 = pneg %p127
      $region22: #{tpu_custom_call.1} parent=5 // pred_check_branch
        %130 = sbr.rel (%p128) target = $region24
      $region23: #{tpu_custom_call.1} parent=5 // pred_region
        // Predicated region
        $region25: #{tpu_custom_call.1} parent=23 // pred_check
          %p131 = pneg %p32
        $region26: #{tpu_custom_call.1} parent=23 // pred_check_branch
          %133 = sbr.rel (%p131) target = $region28
        $region27: #{tpu_custom_call.1} parent=23 // pred_region
          %s134 = smul.u32 32, %s12
          %p135 = scmp.lt.s32.totalorder %s134, 63
          %s136 = scalar_select %p135, %s134, 63
          %s137 = smul.addr %s136, 8
          %s138 = scalar_lea.vmem %s0, %s137
          %s139 = smul.u32 32, %s12
        $region28: #{tpu_custom_call.1} parent=23 // pred_fallthru
          _
      $region24: #{tpu_custom_call.1} parent=5 // pred_fallthru
        _
      %p140 = scmp.le.s32.totalorder 1, %s12
      %p141 = scmp.lt.s32.totalorder %s12, 3
      %p142 = pnand %p140, %p141
      %p143 = pneg %p142
      // Predicated region
      $region29: #{tpu_custom_call.1} parent=5 // pred_check
        _
      $region30: #{tpu_custom_call.1} parent=5 // pred_check_branch
        %145 = sbr.rel (%p142) target = $region32
      $region31: #{tpu_custom_call.1} parent=5 // pred_region
        %s146 = ssub.s32 %s12, 1
        %s147 = smul.u32 32, %s17
        %p148 = scmp.lt.s32.totalorder %s147, 63
        %s149 = scalar_select %p148, %s147, 63
        %s150 = smul.addr %s149, 8
        %s151 = scalar_lea.vmem %s0, %s150
        %p152 = pneg %p38
        %p153 = pneg %p35
        %p154 = pneg %p59
        %p155 = pneg %p56
        %p156 = pneg %p80
        %p157 = pneg %p77
        %p158 = pneg %p106
        %p159 = pneg %p103
        %s160 = sand.u32 %s93, 1
        %s161 = scalar_lea.sflag [#allocation3], %s160
        %s162 = sand.u32 %s93, 1
        %s163 = smul.addr %s162, 256
        %s164 = scalar_lea.vmem [#allocation2], %s163
        %s165 = smul.u32 32, %s17
        %p166 = scmp.lt.s32.totalorder %s165, 63
        %s167 = scalar_select %p166, %s165, 63
        %s168 = smul.addr %s167, 8
        %s169 = scalar_lea.vmem %s0, %s168
        %s170 = smul.u32 32, %s17
        %s171 = smul.u32 32, %s17
        %v173 = vld [vmem:[%s169] sm:$0xff]
        %v174 = vld [vmem:[%s169 + $0x8] sm:$0xff]
        %v175 = vld [vmem:[%s169 + $0x10] sm:$0xff]
        %v176 = vld [vmem:[%s169 + $0x18] sm:$0xff]
        %v177 = vld [vmem:[%s169 + $0x20] sm:$0xff]
        %v178 = vld [vmem:[%s169 + $0x28] sm:$0xff]
        %v179 = vld [vmem:[%s169 + $0x30] sm:$0xff]
        %v180 = vld [vmem:[%s169 + $0x38] sm:$0xff]
        %v181 = vld [vmem:[%s169 + $0x40] sm:$0xff]
        %v182 = vld [vmem:[%s169 + $0x48] sm:$0xff]
        %v183 = vld [vmem:[%s169 + $0x50] sm:$0xff]
        %v184 = vld [vmem:[%s169 + $0x58] sm:$0xff]
        %v185 = vld [vmem:[%s169 + $0x60] sm:$0xff]
        %v186 = vld [vmem:[%s169 + $0x68] sm:$0xff]
        %v187 = vld [vmem:[%s169 + $0x70] sm:$0xff]
        %v188 = vld [vmem:[%s169 + $0x78] sm:$0xff]
        %v189 = vld [vmem:[%s169 + $0x80] sm:$0xff]
        %v190 = vld [vmem:[%s169 + $0x88] sm:$0xff]
        %v191 = vld [vmem:[%s169 + $0x90] sm:$0xff]
        %v192 = vld [vmem:[%s169 + $0x98] sm:$0xff]
        %v193 = vld [vmem:[%s169 + $0xa0] sm:$0xff]
        %v194 = vld [vmem:[%s169 + $0xa8] sm:$0xff]
        %v195 = vld [vmem:[%s169 + $0xb0] sm:$0xff]
        %v196 = vld [vmem:[%s169 + $0xb8] sm:$0xff]
        %v197 = vld [vmem:[%s169 + $0xc0] sm:$0xff]
        %v198 = vld [vmem:[%s169 + $0xc8] sm:$0xff]
        %v199 = vld [vmem:[%s169 + $0xd0] sm:$0xff]
        %v200 = vld [vmem:[%s169 + $0xd8] sm:$0xff]
        %v201 = vld [vmem:[%s169 + $0xe0] sm:$0xff]
        %v202 = vld [vmem:[%s169 + $0xe8] sm:$0xff]
        %v203 = vld [vmem:[%s169 + $0xf0] sm:$0xff]
        %v204 = vld [vmem:[%s169 + $0xf8] sm:$0xff]
        %v205 = vlaneseq
        %v206 = vand.u32 %v205, 127
        %207 = vset.pattern.permute.xlu0 0
        %208 = vperm.xlu0 %207, %v173
        %v209 = vpop.permute.xlu0 %208
        %210 = vset.pattern.permute.xlu0 0
        %211 = vperm.xlu0 %210, %v174
        %v212 = vpop.permute.xlu0 %211
        %213 = vset.pattern.permute.xlu0 0
        %214 = vperm.xlu0 %213, %v175
        %v215 = vpop.permute.xlu0 %214
        %216 = vset.pattern.permute.xlu0 0
        %217 = vperm.xlu0 %216, %v176
        %v218 = vpop.permute.xlu0 %217
        %219 = vset.pattern.permute.xlu0 0
        %220 = vperm.xlu0 %219, %v177
        %v221 = vpop.permute.xlu0 %220
        %222 = vset.pattern.permute.xlu0 0
        %223 = vperm.xlu0 %222, %v178
        %v224 = vpop.permute.xlu0 %223
        %225 = vset.pattern.permute.xlu0 0
        %226 = vperm.xlu0 %225, %v179
        %v227 = vpop.permute.xlu0 %226
        %228 = vset.pattern.permute.xlu0 0
        %229 = vperm.xlu0 %228, %v180
        %v230 = vpop.permute.xlu0 %229
        %231 = vset.pattern.permute.xlu0 0
        %232 = vperm.xlu0 %231, %v181
        %v233 = vpop.permute.xlu0 %232
        %234 = vset.pattern.permute.xlu0 0
        %235 = vperm.xlu0 %234, %v182
        %v236 = vpop.permute.xlu0 %235
        %237 = vset.pattern.permute.xlu0 0
        %238 = vperm.xlu0 %237, %v183
        %v239 = vpop.permute.xlu0 %238
        %240 = vset.pattern.permute.xlu0 0
        %241 = vperm.xlu0 %240, %v184
        %v242 = vpop.permute.xlu0 %241
        %243 = vset.pattern.permute.xlu0 0
        %244 = vperm.xlu0 %243, %v185
        %v245 = vpop.permute.xlu0 %244
        %246 = vset.pattern.permute.xlu0 0
        %247 = vperm.xlu0 %246, %v186
        %v248 = vpop.permute.xlu0 %247
        %249 = vset.pattern.permute.xlu0 0
        %250 = vperm.xlu0 %249, %v187
        %v251 = vpop.permute.xlu0 %250
        %252 = vset.pattern.permute.xlu0 0
        %253 = vperm.xlu0 %252, %v188
        %v254 = vpop.permute.xlu0 %253
        %255 = vset.pattern.permute.xlu0 0
        %256 = vperm.xlu0 %255, %v189
        %v257 = vpop.permute.xlu0 %256
        %258 = vset.pattern.permute.xlu0 0
        %259 = vperm.xlu0 %258, %v190
        %v260 = vpop.permute.xlu0 %259
        %261 = vset.pattern.permute.xlu0 0
        %262 = vperm.xlu0 %261, %v191
        %v263 = vpop.permute.xlu0 %262
        %264 = vset.pattern.permute.xlu0 0
        %265 = vperm.xlu0 %264, %v192
        %v266 = vpop.permute.xlu0 %265
        %267 = vset.pattern.permute.xlu0 0
        %268 = vperm.xlu0 %267, %v193
        %v269 = vpop.permute.xlu0 %268
        %270 = vset.pattern.permute.xlu0 0
        %271 = vperm.xlu0 %270, %v194
        %v272 = vpop.permute.xlu0 %271
        %273 = vset.pattern.permute.xlu0 0
        %274 = vperm.xlu0 %273, %v195
        %v275 = vpop.permute.xlu0 %274
        %276 = vset.pattern.permute.xlu0 0
        %277 = vperm.xlu0 %276, %v196
        %v278 = vpop.permute.xlu0 %277
        %279 = vset.pattern.permute.xlu0 0
        %280 = vperm.xlu0 %279, %v197
        %v281 = vpop.permute.xlu0 %280
        %282 = vset.pattern.permute.xlu0 0
        %283 = vperm.xlu0 %282, %v198
        %v284 = vpop.permute.xlu0 %283
        %285 = vset.pattern.permute.xlu0 0
        %286 = vperm.xlu0 %285, %v199
        %v287 = vpop.permute.xlu0 %286
        %288 = vset.pattern.permute.xlu0 0
        %289 = vperm.xlu0 %288, %v200
        %v290 = vpop.permute.xlu0 %289
        %291 = vset.pattern.permute.xlu0 0
        %292 = vperm.xlu0 %291, %v201
        %v293 = vpop.permute.xlu0 %292
        %294 = vset.pattern.permute.xlu0 0
        %295 = vperm.xlu0 %294, %v202
        %v296 = vpop.permute.xlu0 %295
        %297 = vset.pattern.permute.xlu0 0
        %298 = vperm.xlu0 %297, %v203
        %v299 = vpop.permute.xlu0 %298
        %300 = vset.pattern.permute.xlu0 0
        %301 = vperm.xlu0 %300, %v204
        %v302 = vpop.permute.xlu0 %301
        %vm303 = vcmp.eq.s32.totalorder %v206, %v209
        %vm304 = vcmp.eq.s32.totalorder %v206, %v212
        %vm305 = vcmp.eq.s32.totalorder %v206, %v215
        %vm306 = vcmp.eq.s32.totalorder %v206, %v218
        %vm307 = vcmp.eq.s32.totalorder %v206, %v221
        %vm308 = vcmp.eq.s32.totalorder %v206, %v224
        %vm309 = vcmp.eq.s32.totalorder %v206, %v227
        %vm310 = vcmp.eq.s32.totalorder %v206, %v230
        %vm311 = vcmp.eq.s32.totalorder %v206, %v233
        %vm312 = vcmp.eq.s32.totalorder %v206, %v236
        %vm313 = vcmp.eq.s32.totalorder %v206, %v239
        %vm314 = vcmp.eq.s32.totalorder %v206, %v242
        %vm315 = vcmp.eq.s32.totalorder %v206, %v245
        %vm316 = vcmp.eq.s32.totalorder %v206, %v248
        %vm317 = vcmp.eq.s32.totalorder %v206, %v251
        %vm318 = vcmp.eq.s32.totalorder %v206, %v254
        %vm319 = vcmp.eq.s32.totalorder %v206, %v257
        %vm320 = vcmp.eq.s32.totalorder %v206, %v260
        %vm321 = vcmp.eq.s32.totalorder %v206, %v263
        %vm322 = vcmp.eq.s32.totalorder %v206, %v266
        %vm323 = vcmp.eq.s32.totalorder %v206, %v269
        %vm324 = vcmp.eq.s32.totalorder %v206, %v272
        %vm325 = vcmp.eq.s32.totalorder %v206, %v275
        %vm326 = vcmp.eq.s32.totalorder %v206, %v278
        %vm327 = vcmp.eq.s32.totalorder %v206, %v281
        %vm328 = vcmp.eq.s32.totalorder %v206, %v284
        %vm329 = vcmp.eq.s32.totalorder %v206, %v287
        %vm330 = vcmp.eq.s32.totalorder %v206, %v290
        %vm331 = vcmp.eq.s32.totalorder %v206, %v293
        %vm332 = vcmp.eq.s32.totalorder %v206, %v296
        %vm333 = vcmp.eq.s32.totalorder %v206, %v299
        %vm334 = vcmp.eq.s32.totalorder %v206, %v302
        %v335 = vsub.s32 %v206, 119
        %336 = vset.pattern.permute.xlu0 1
        %337 = vperm.xlu0 %336, %v173
        %v338 = vpop.permute.xlu0 %337
        %339 = vset.pattern.permute.xlu0 1
        %340 = vperm.xlu0 %339, %v174
        %v341 = vpop.permute.xlu0 %340
        %342 = vset.pattern.permute.xlu0 1
        %343 = vperm.xlu0 %342, %v175
        %v344 = vpop.permute.xlu0 %343
        %345 = vset.pattern.permute.xlu0 1
        %346 = vperm.xlu0 %345, %v176
        %v347 = vpop.permute.xlu0 %346
        %348 = vset.pattern.permute.xlu0 1
        %349 = vperm.xlu0 %348, %v177
        %v350 = vpop.permute.xlu0 %349
        %351 = vset.pattern.permute.xlu0 1
        %352 = vperm.xlu0 %351, %v178
        %v353 = vpop.permute.xlu0 %352
        %354 = vset.pattern.permute.xlu0 1
        %355 = vperm.xlu0 %354, %v179
        %v356 = vpop.permute.xlu0 %355
        %357 = vset.pattern.permute.xlu0 1
        %358 = vperm.xlu0 %357, %v180
        %v359 = vpop.permute.xlu0 %358
        %360 = vset.pattern.permute.xlu0 1
        %361 = vperm.xlu0 %360, %v181
        %v362 = vpop.permute.xlu0 %361
        %363 = vset.pattern.permute.xlu0 1
        %364 = vperm.xlu0 %363, %v182
        %v365 = vpop.permute.xlu0 %364
        %366 = vset.pattern.permute.xlu0 1
        %367 = vperm.xlu0 %366, %v183
        %v368 = vpop.permute.xlu0 %367
        %369 = vset.pattern.permute.xlu0 1
        %370 = vperm.xlu0 %369, %v184
        %v371 = vpop.permute.xlu0 %370
        %372 = vset.pattern.permute.xlu0 1
        %373 = vperm.xlu0 %372, %v185
        %v374 = vpop.permute.xlu0 %373
        %375 = vset.pattern.permute.xlu0 1
        %376 = vperm.xlu0 %375, %v186
        %v377 = vpop.permute.xlu0 %376
        %378 = vset.pattern.permute.xlu0 1
        %379 = vperm.xlu0 %378, %v187
        %v380 = vpop.permute.xlu0 %379
        %381 = vset.pattern.permute.xlu0 1
        %382 = vperm.xlu0 %381, %v188
        %v383 = vpop.permute.xlu0 %382
        %384 = vset.pattern.permute.xlu0 1
        %385 = vperm.xlu0 %384, %v189
        %v386 = vpop.permute.xlu0 %385
        %387 = vset.pattern.permute.xlu0 1
        %388 = vperm.xlu0 %387, %v190
        %v389 = vpop.permute.xlu0 %388
        %390 = vset.pattern.permute.xlu0 1
        %391 = vperm.xlu0 %390, %v191
        %v392 = vpop.permute.xlu0 %391
        %393 = vset.pattern.permute.xlu0 1
        %394 = vperm.xlu0 %393, %v192
        %v395 = vpop.permute.xlu0 %394
        %396 = vset.pattern.permute.xlu0 1
        %397 = vperm.xlu0 %396, %v193
        %v398 = vpop.permute.xlu0 %397
        %399 = vset.pattern.permute.xlu0 1
        %400 = vperm.xlu0 %399, %v194
        %v401 = vpop.permute.xlu0 %400
        %402 = vset.pattern.permute.xlu0 1
        %403 = vperm.xlu0 %402, %v195
        %v404 = vpop.permute.xlu0 %403
        %405 = vset.pattern.permute.xlu0 1
        %406 = vperm.xlu0 %405, %v196
        %v407 = vpop.permute.xlu0 %406
        %408 = vset.pattern.permute.xlu0 1
        %409 = vperm.xlu0 %408, %v197
        %v410 = vpop.permute.xlu0 %409
        %411 = vset.pattern.permute.xlu0 1
        %412 = vperm.xlu0 %411, %v198
        %v413 = vpop.permute.xlu0 %412
        %414 = vset.pattern.permute.xlu0 1
        %415 = vperm.xlu0 %414, %v199
        %v416 = vpop.permute.xlu0 %415
        %417 = vset.pattern.permute.xlu0 1
        %418 = vperm.xlu0 %417, %v200
        %v419 = vpop.permute.xlu0 %418
        %420 = vset.pattern.permute.xlu0 1
        %421 = vperm.xlu0 %420, %v201
        %v422 = vpop.permute.xlu0 %421
        %423 = vset.pattern.permute.xlu0 1
        %424 = vperm.xlu0 %423, %v202
        %v425 = vpop.permute.xlu0 %424
        %426 = vset.pattern.permute.xlu0 1
        %427 = vperm.xlu0 %426, %v203
        %v428 = vpop.permute.xlu0 %427
        %429 = vset.pattern.permute.xlu0 1
        %430 = vperm.xlu0 %429, %v204
        %v431 = vpop.permute.xlu0 %430
        %vm432 = vcmp.eq.s32.totalorder %v335, %v338
        %vm433 = vcmp.eq.s32.totalorder %v335, %v341
        %vm434 = vcmp.eq.s32.totalorder %v335, %v344
        %vm435 = vcmp.eq.s32.totalorder %v335, %v347
        %vm436 = vcmp.eq.s32.totalorder %v335, %v350
        %vm437 = vcmp.eq.s32.totalorder %v335, %v353
        %vm438 = vcmp.eq.s32.totalorder %v335, %v356
        %vm439 = vcmp.eq.s32.totalorder %v335, %v359
        %vm440 = vcmp.eq.s32.totalorder %v335, %v362
        %vm441 = vcmp.eq.s32.totalorder %v335, %v365
        %vm442 = vcmp.eq.s32.totalorder %v335, %v368
        %vm443 = vcmp.eq.s32.totalorder %v335, %v371
        %vm444 = vcmp.eq.s32.totalorder %v335, %v374
        %vm445 = vcmp.eq.s32.totalorder %v335, %v377
        %vm446 = vcmp.eq.s32.totalorder %v335, %v380
        %vm447 = vcmp.eq.s32.totalorder %v335, %v383
        %vm448 = vcmp.eq.s32.totalorder %v335, %v386
        %vm449 = vcmp.eq.s32.totalorder %v335, %v389
        %vm450 = vcmp.eq.s32.totalorder %v335, %v392
        %vm451 = vcmp.eq.s32.totalorder %v335, %v395
        %vm452 = vcmp.eq.s32.totalorder %v335, %v398
        %vm453 = vcmp.eq.s32.totalorder %v335, %v401
        %vm454 = vcmp.eq.s32.totalorder %v335, %v404
        %vm455 = vcmp.eq.s32.totalorder %v335, %v407
        %vm456 = vcmp.eq.s32.totalorder %v335, %v410
        %vm457 = vcmp.eq.s32.totalorder %v335, %v413
        %vm458 = vcmp.eq.s32.totalorder %v335, %v416
        %vm459 = vcmp.eq.s32.totalorder %v335, %v419
        %vm460 = vcmp.eq.s32.totalorder %v335, %v422
        %vm461 = vcmp.eq.s32.totalorder %v335, %v425
        %vm462 = vcmp.eq.s32.totalorder %v335, %v428
        %vm463 = vcmp.eq.s32.totalorder %v335, %v431
        %vm464 = vmor %vm303, %vm432
        %vm465 = vmor %vm304, %vm433
        %vm466 = vmor %vm305, %vm434
        %vm467 = vmor %vm306, %vm435
        %vm468 = vmor %vm307, %vm436
        %vm469 = vmor %vm308, %vm437
        %vm470 = vmor %vm309, %vm438
        %vm471 = vmor %vm310, %vm439
        %vm472 = vmor %vm311, %vm440
        %vm473 = vmor %vm312, %vm441
        %vm474 = vmor %vm313, %vm442
        %vm475 = vmor %vm314, %vm443
        %vm476 = vmor %vm315, %vm444
        %vm477 = vmor %vm316, %vm445
        %vm478 = vmor %vm317, %vm446
        %vm479 = vmor %vm318, %vm447
        %vm480 = vmor %vm319, %vm448
        %vm481 = vmor %vm320, %vm449
        %vm482 = vmor %vm321, %vm450
        %vm483 = vmor %vm322, %vm451
        %vm484 = vmor %vm323, %vm452
        %vm485 = vmor %vm324, %vm453
        %vm486 = vmor %vm325, %vm454
        %vm487 = vmor %vm326, %vm455
        %vm488 = vmor %vm327, %vm456
        %vm489 = vmor %vm328, %vm457
        %vm490 = vmor %vm329, %vm458
        %vm491 = vmor %vm330, %vm459
        %vm492 = vmor %vm331, %vm460
        %vm493 = vmor %vm332, %vm461
        %vm494 = vmor %vm333, %vm462
        %vm495 = vmor %vm334, %vm463
        %v496 = vsel %vm464, 1, 0
        %v497 = vsel %vm465, 1, 0
        %v498 = vsel %vm466, 1, 0
        %v499 = vsel %vm467, 1, 0
        %v500 = vsel %vm468, 1, 0
        %v501 = vsel %vm469, 1, 0
        %v502 = vsel %vm470, 1, 0
        %v503 = vsel %vm471, 1, 0
        %v504 = vsel %vm472, 1, 0
        %v505 = vsel %vm473, 1, 0
        %v506 = vsel %vm474, 1, 0
        %v507 = vsel %vm475, 1, 0
        %v508 = vsel %vm476, 1, 0
        %v509 = vsel %vm477, 1, 0
        %v510 = vsel %vm478, 1, 0
        %v511 = vsel %vm479, 1, 0
        %v512 = vsel %vm480, 1, 0
        %v513 = vsel %vm481, 1, 0
        %v514 = vsel %vm482, 1, 0
        %v515 = vsel %vm483, 1, 0
        %v516 = vsel %vm484, 1, 0
        %v517 = vsel %vm485, 1, 0
        %v518 = vsel %vm486, 1, 0
        %v519 = vsel %vm487, 1, 0
        %v520 = vsel %vm488, 1, 0
        %v521 = vsel %vm489, 1, 0
        %v522 = vsel %vm490, 1, 0
        %v523 = vsel %vm491, 1, 0
        %v524 = vsel %vm492, 1, 0
        %v525 = vsel %vm493, 1, 0
        %v526 = vsel %vm494, 1, 0
        %v527 = vsel %vm495, 1, 0
        %v528 = vcvt.s32.f32 %v496
        %v529 = vcvt.s32.f32 %v497
        %v530 = vcvt.s32.f32 %v498
        %v531 = vcvt.s32.f32 %v499
        %v532 = vcvt.s32.f32 %v500
        %v533 = vcvt.s32.f32 %v501
        %v534 = vcvt.s32.f32 %v502
        %v535 = vcvt.s32.f32 %v503
        %v536 = vcvt.s32.f32 %v504
        %v537 = vcvt.s32.f32 %v505
        %v538 = vcvt.s32.f32 %v506
        %v539 = vcvt.s32.f32 %v507
        %v540 = vcvt.s32.f32 %v508
        %v541 = vcvt.s32.f32 %v509
        %v542 = vcvt.s32.f32 %v510
        %v543 = vcvt.s32.f32 %v511
        %v544 = vcvt.s32.f32 %v512
        %v545 = vcvt.s32.f32 %v513
        %v546 = vcvt.s32.f32 %v514
        %v547 = vcvt.s32.f32 %v515
        %v548 = vcvt.s32.f32 %v516
        %v549 = vcvt.s32.f32 %v517
        %v550 = vcvt.s32.f32 %v518
        %v551 = vcvt.s32.f32 %v519
        %v552 = vcvt.s32.f32 %v520
        %v553 = vcvt.s32.f32 %v521
        %v554 = vcvt.s32.f32 %v522
        %v555 = vcvt.s32.f32 %v523
        %v556 = vcvt.s32.f32 %v524
        %v557 = vcvt.s32.f32 %v525
        %v558 = vcvt.s32.f32 %v526
        %v559 = vcvt.s32.f32 %v527
        %v560 = vpack.c.bf16 %v529, %v528
        %v561 = vpack.c.bf16 %v531, %v530
        %v562 = vpack.c.bf16 %v533, %v532
        %v563 = vpack.c.bf16 %v535, %v534
        %v564 = vpack.c.bf16 %v537, %v536
        %v565 = vpack.c.bf16 %v539, %v538
        %v566 = vpack.c.bf16 %v541, %v540
        %v567 = vpack.c.bf16 %v543, %v542
        %v568 = vpack.c.bf16 %v545, %v544
        %v569 = vpack.c.bf16 %v547, %v546
        %v570 = vpack.c.bf16 %v549, %v548
        %v571 = vpack.c.bf16 %v551, %v550
        %v572 = vpack.c.bf16 %v553, %v552
        %v573 = vpack.c.bf16 %v555, %v554
        %v574 = vpack.c.bf16 %v557, %v556
        %v575 = vpack.c.bf16 %v559, %v558
        %576 = vset.pattern.permute.xlu0 2
        %577 = vperm.xlu0 %576, %v173
        %v578 = vpop.permute.xlu0 %577
        %579 = vset.pattern.permute.xlu0 2
        %580 = vperm.xlu0 %579, %v174
        %v581 = vpop.permute.xlu0 %580
        %582 = vset.pattern.permute.xlu0 2
        %583 = vperm.xlu0 %582, %v175
        %v584 = vpop.permute.xlu0 %583
        %585 = vset.pattern.permute.xlu0 2
        %586 = vperm.xlu0 %585, %v176
        %v587 = vpop.permute.xlu0 %586
        %588 = vset.pattern.permute.xlu0 2
        %589 = vperm.xlu0 %588, %v177
        %v590 = vpop.permute.xlu0 %589
        %591 = vset.pattern.permute.xlu0 2
        %592 = vperm.xlu0 %591, %v178
        %v593 = vpop.permute.xlu0 %592
        %594 = vset.pattern.permute.xlu0 2
        %595 = vperm.xlu0 %594, %v179
        %v596 = vpop.permute.xlu0 %595
        %597 = vset.pattern.permute.xlu0 2
        %598 = vperm.xlu0 %597, %v180
        %v599 = vpop.permute.xlu0 %598
        %600 = vset.pattern.permute.xlu0 2
        %601 = vperm.xlu0 %600, %v181
        %v602 = vpop.permute.xlu0 %601
        %603 = vset.pattern.permute.xlu0 2
        %604 = vperm.xlu0 %603, %v182
        %v605 = vpop.permute.xlu0 %604
        %606 = vset.pattern.permute.xlu0 2
        %607 = vperm.xlu0 %606, %v183
        %v608 = vpop.permute.xlu0 %607
        %609 = vset.pattern.permute.xlu0 2
        %610 = vperm.xlu0 %609, %v184
        %v611 = vpop.permute.xlu0 %610
        %612 = vset.pattern.permute.xlu0 2
        %613 = vperm.xlu0 %612, %v185
        %v614 = vpop.permute.xlu0 %613
        %615 = vset.pattern.permute.xlu0 2
        %616 = vperm.xlu0 %615, %v186
        %v617 = vpop.permute.xlu0 %616
        %618 = vset.pattern.permute.xlu0 2
        %619 = vperm.xlu0 %618, %v187
        %v620 = vpop.permute.xlu0 %619
        %621 = vset.pattern.permute.xlu0 2
        %622 = vperm.xlu0 %621, %v188
        %v623 = vpop.permute.xlu0 %622
        %624 = vset.pattern.permute.xlu0 2
        %625 = vperm.xlu0 %624, %v189
        %v626 = vpop.permute.xlu0 %625
        %627 = vset.pattern.permute.xlu0 2
        %628 = vperm.xlu0 %627, %v190
        %v629 = vpop.permute.xlu0 %628
        %630 = vset.pattern.permute.xlu0 2
        %631 = vperm.xlu0 %630, %v191
        %v632 = vpop.permute.xlu0 %631
        %633 = vset.pattern.permute.xlu0 2
        %634 = vperm.xlu0 %633, %v192
        %v635 = vpop.permute.xlu0 %634
        %636 = vset.pattern.permute.xlu0 2
        %637 = vperm.xlu0 %636, %v193
        %v638 = vpop.permute.xlu0 %637
        %639 = vset.pattern.permute.xlu0 2
        %640 = vperm.xlu0 %639, %v194
        %v641 = vpop.permute.xlu0 %640
        %642 = vset.pattern.permute.xlu0 2
        %643 = vperm.xlu0 %642, %v195
        %v644 = vpop.permute.xlu0 %643
        %645 = vset.pattern.permute.xlu0 2
        %646 = vperm.xlu0 %645, %v196
        %v647 = vpop.permute.xlu0 %646
        %648 = vset.pattern.permute.xlu0 2
        %649 = vperm.xlu0 %648, %v197
        %v650 = vpop.permute.xlu0 %649
        %651 = vset.pattern.permute.xlu0 2
        %652 = vperm.xlu0 %651, %v198
        %v653 = vpop.permute.xlu0 %652
        %654 = vset.pattern.permute.xlu0 2
        %655 = vperm.xlu0 %654, %v199
        %v656 = vpop.permute.xlu0 %655
        %657 = vset.pattern.permute.xlu0 2
        %658 = vperm.xlu0 %657, %v200
        %v659 = vpop.permute.xlu0 %658
        %660 = vset.pattern.permute.xlu0 2
        %661 = vperm.xlu0 %660, %v201
        %v662 = vpop.permute.xlu0 %661
        %663 = vset.pattern.permute.xlu0 2
        %664 = vperm.xlu0 %663, %v202
        %v665 = vpop.permute.xlu0 %664
        %666 = vset.pattern.permute.xlu0 2
        %667 = vperm.xlu0 %666, %v203
        %v668 = vpop.permute.xlu0 %667
        %669 = vset.pattern.permute.xlu0 2
        %670 = vperm.xlu0 %669, %v204
        %v671 = vpop.permute.xlu0 %670
        %vm672 = vcmp.eq.s32.totalorder %v206, %v578
        %vm673 = vcmp.eq.s32.totalorder %v206, %v581
        %vm674 = vcmp.eq.s32.totalorder %v206, %v584
        %vm675 = vcmp.eq.s32.totalorder %v206, %v587
        %vm676 = vcmp.eq.s32.totalorder %v206, %v590
        %vm677 = vcmp.eq.s32.totalorder %v206, %v593
        %vm678 = vcmp.eq.s32.totalorder %v206, %v596
        %vm679 = vcmp.eq.s32.totalorder %v206, %v599
        %vm680 = vcmp.eq.s32.totalorder %v206, %v602
        %vm681 = vcmp.eq.s32.totalorder %v206, %v605
        %vm682 = vcmp.eq.s32.totalorder %v206, %v608
        %vm683 = vcmp.eq.s32.totalorder %v206, %v611
        %vm684 = vcmp.eq.s32.totalorder %v206, %v614
        %vm685 = vcmp.eq.s32.totalorder %v206, %v617
        %vm686 = vcmp.eq.s32.totalorder %v206, %v620
        %vm687 = vcmp.eq.s32.totalorder %v206, %v623
        %vm688 = vcmp.eq.s32.totalorder %v206, %v626
        %vm689 = vcmp.eq.s32.totalorder %v206, %v629
        %vm690 = vcmp.eq.s32.totalorder %v206, %v632
        %vm691 = vcmp.eq.s32.totalorder %v206, %v635
        %vm692 = vcmp.eq.s32.totalorder %v206, %v638
        %vm693 = vcmp.eq.s32.totalorder %v206, %v641
        %vm694 = vcmp.eq.s32.totalorder %v206, %v644
        %vm695 = vcmp.eq.s32.totalorder %v206, %v647
        %vm696 = vcmp.eq.s32.totalorder %v206, %v650
        %vm697 = vcmp.eq.s32.totalorder %v206, %v653
        %vm698 = vcmp.eq.s32.totalorder %v206, %v656
        %vm699 = vcmp.eq.s32.totalorder %v206, %v659
        %vm700 = vcmp.eq.s32.totalorder %v206, %v662
        %vm701 = vcmp.eq.s32.totalorder %v206, %v665
        %vm702 = vcmp.eq.s32.totalorder %v206, %v668
        %vm703 = vcmp.eq.s32.totalorder %v206, %v671
        %v704 = vsub.s32 %v206, 12
        %705 = vset.pattern.permute.xlu0 3
        %706 = vperm.xlu0 %705, %v173
        %v707 = vpop.permute.xlu0 %706
        %708 = vset.pattern.permute.xlu0 3
        %709 = vperm.xlu0 %708, %v174
        %v710 = vpop.permute.xlu0 %709
        %711 = vset.pattern.permute.xlu0 3
        %712 = vperm.xlu0 %711, %v175
        %v713 = vpop.permute.xlu0 %712
        %714 = vset.pattern.permute.xlu0 3
        %715 = vperm.xlu0 %714, %v176
        %v716 = vpop.permute.xlu0 %715
        %717 = vset.pattern.permute.xlu0 3
        %718 = vperm.xlu0 %717, %v177
        %v719 = vpop.permute.xlu0 %718
        %720 = vset.pattern.permute.xlu0 3
        %721 = vperm.xlu0 %720, %v178
        %v722 = vpop.permute.xlu0 %721
        %723 = vset.pattern.permute.xlu0 3
        %724 = vperm.xlu0 %723, %v179
        %v725 = vpop.permute.xlu0 %724
        %726 = vset.pattern.permute.xlu0 3
        %727 = vperm.xlu0 %726, %v180
        %v728 = vpop.permute.xlu0 %727
        %729 = vset.pattern.permute.xlu0 3
        %730 = vperm.xlu0 %729, %v181
        %v731 = vpop.permute.xlu0 %730
        %732 = vset.pattern.permute.xlu0 3
        %733 = vperm.xlu0 %732, %v182
        %v734 = vpop.permute.xlu0 %733
        %735 = vset.pattern.permute.xlu0 3
        %736 = vperm.xlu0 %735, %v183
        %v737 = vpop.permute.xlu0 %736
        %738 = vset.pattern.permute.xlu0 3
        %739 = vperm.xlu0 %738, %v184
        %v740 = vpop.permute.xlu0 %739
        %741 = vset.pattern.permute.xlu0 3
        %742 = vperm.xlu0 %741, %v185
        %v743 = vpop.permute.xlu0 %742
        %744 = vset.pattern.permute.xlu0 3
        %745 = vperm.xlu0 %744, %v186
        %v746 = vpop.permute.xlu0 %745
        %747 = vset.pattern.permute.xlu0 3
        %748 = vperm.xlu0 %747, %v187
        %v749 = vpop.permute.xlu0 %748
        %750 = vset.pattern.permute.xlu0 3
        %751 = vperm.xlu0 %750, %v188
        %v752 = vpop.permute.xlu0 %751
        %753 = vset.pattern.permute.xlu0 3
        %754 = vperm.xlu0 %753, %v189
        %v755 = vpop.permute.xlu0 %754
        %756 = vset.pattern.permute.xlu0 3
        %757 = vperm.xlu0 %756, %v190
        %v758 = vpop.permute.xlu0 %757
        %759 = vset.pattern.permute.xlu0 3
        %760 = vperm.xlu0 %759, %v191
        %v761 = vpop.permute.xlu0 %760
        %762 = vset.pattern.permute.xlu0 3
        %763 = vperm.xlu0 %762, %v192
        %v764 = vpop.permute.xlu0 %763
        %765 = vset.pattern.permute.xlu0 3
        %766 = vperm.xlu0 %765, %v193
        %v767 = vpop.permute.xlu0 %766
        %768 = vset.pattern.permute.xlu0 3
        %769 = vperm.xlu0 %768, %v194
        %v770 = vpop.permute.xlu0 %769
        %771 = vset.pattern.permute.xlu0 3
        %772 = vperm.xlu0 %771, %v195
        %v773 = vpop.permute.xlu0 %772
        %774 = vset.pattern.permute.xlu0 3
        %775 = vperm.xlu0 %774, %v196
        %v776 = vpop.permute.xlu0 %775
        %777 = vset.pattern.permute.xlu0 3
        %778 = vperm.xlu0 %777, %v197
        %v779 = vpop.permute.xlu0 %778
        %780 = vset.pattern.permute.xlu0 3
        %781 = vperm.xlu0 %780, %v198
        %v782 = vpop.permute.xlu0 %781
        %783 = vset.pattern.permute.xlu0 3
        %784 = vperm.xlu0 %783, %v199
        %v785 = vpop.permute.xlu0 %784
        %786 = vset.pattern.permute.xlu0 3
        %787 = vperm.xlu0 %786, %v200
        %v788 = vpop.permute.xlu0 %787
        %789 = vset.pattern.permute.xlu0 3
        %790 = vperm.xlu0 %789, %v201
        %v791 = vpop.permute.xlu0 %790
        %792 = vset.pattern.permute.xlu0 3
        %793 = vperm.xlu0 %792, %v202
        %v794 = vpop.permute.xlu0 %793
        %795 = vset.pattern.permute.xlu0 3
        %796 = vperm.xlu0 %795, %v203
        %v797 = vpop.permute.xlu0 %796
        %798 = vset.pattern.permute.xlu0 3
        %799 = vperm.xlu0 %798, %v204
        %v800 = vpop.permute.xlu0 %799
        %vm801 = vcmp.eq.s32.totalorder %v704, %v707
        %vm802 = vcmp.eq.s32.totalorder %v704, %v710
        %vm803 = vcmp.eq.s32.totalorder %v704, %v713
        %vm804 = vcmp.eq.s32.totalorder %v704, %v716
        %vm805 = vcmp.eq.s32.totalorder %v704, %v719
        %vm806 = vcmp.eq.s32.totalorder %v704, %v722
        %vm807 = vcmp.eq.s32.totalorder %v704, %v725
        %vm808 = vcmp.eq.s32.totalorder %v704, %v728
        %vm809 = vcmp.eq.s32.totalorder %v704, %v731
        %vm810 = vcmp.eq.s32.totalorder %v704, %v734
        %vm811 = vcmp.eq.s32.totalorder %v704, %v737
        %vm812 = vcmp.eq.s32.totalorder %v704, %v740
        %vm813 = vcmp.eq.s32.totalorder %v704, %v743
        %vm814 = vcmp.eq.s32.totalorder %v704, %v746
        %vm815 = vcmp.eq.s32.totalorder %v704, %v749
        %vm816 = vcmp.eq.s32.totalorder %v704, %v752
        %vm817 = vcmp.eq.s32.totalorder %v704, %v755
        %vm818 = vcmp.eq.s32.totalorder %v704, %v758
        %vm819 = vcmp.eq.s32.totalorder %v704, %v761
        %vm820 = vcmp.eq.s32.totalorder %v704, %v764
        %vm821 = vcmp.eq.s32.totalorder %v704, %v767
        %vm822 = vcmp.eq.s32.totalorder %v704, %v770
        %vm823 = vcmp.eq.s32.totalorder %v704, %v773
        %vm824 = vcmp.eq.s32.totalorder %v704, %v776
        %vm825 = vcmp.eq.s32.totalorder %v704, %v779
        %vm826 = vcmp.eq.s32.totalorder %v704, %v782
        %vm827 = vcmp.eq.s32.totalorder %v704, %v785
        %vm828 = vcmp.eq.s32.totalorder %v704, %v788
        %vm829 = vcmp.eq.s32.totalorder %v704, %v791
        %vm830 = vcmp.eq.s32.totalorder %v704, %v794
        %vm831 = vcmp.eq.s32.totalorder %v704, %v797
        %vm832 = vcmp.eq.s32.totalorder %v704, %v800
        %vm833 = vmor %vm672, %vm801
        %vm834 = vmor %vm673, %vm802
        %vm835 = vmor %vm674, %vm803
        %vm836 = vmor %vm675, %vm804
        %vm837 = vmor %vm676, %vm805
        %vm838 = vmor %vm677, %vm806
        %vm839 = vmor %vm678, %vm807
        %vm840 = vmor %vm679, %vm808
        %vm841 = vmor %vm680, %vm809
        %vm842 = vmor %vm681, %vm810
        %vm843 = vmor %vm682, %vm811
        %vm844 = vmor %vm683, %vm812
        %vm845 = vmor %vm684, %vm813
        %vm846 = vmor %vm685, %vm814
        %vm847 = vmor %vm686, %vm815
        %vm848 = vmor %vm687, %vm816
        %vm849 = vmor %vm688, %vm817
        %vm850 = vmor %vm689, %vm818
        %vm851 = vmor %vm690, %vm819
        %vm852 = vmor %vm691, %vm820
        %vm853 = vmor %vm692, %vm821
        %vm854 = vmor %vm693, %vm822
        %vm855 = vmor %vm694, %vm823
        %vm856 = vmor %vm695, %vm824
        %vm857 = vmor %vm696, %vm825
        %vm858 = vmor %vm697, %vm826
        %vm859 = vmor %vm698, %vm827
        %vm860 = vmor %vm699, %vm828
        %vm861 = vmor %vm700, %vm829
        %vm862 = vmor %vm701, %vm830
        %vm863 = vmor %vm702, %vm831
        %vm864 = vmor %vm703, %vm832
        %v865 = vsub.s32 %v206, 24
        %866 = vset.pattern.permute.xlu0 4
        %867 = vperm.xlu0 %866, %v173
        %v868 = vpop.permute.xlu0 %867
        %869 = vset.pattern.permute.xlu0 4
        %870 = vperm.xlu0 %869, %v174
        %v871 = vpop.permute.xlu0 %870
        %872 = vset.pattern.permute.xlu0 4
        %873 = vperm.xlu0 %872, %v175
        %v874 = vpop.permute.xlu0 %873
        %875 = vset.pattern.permute.xlu0 4
        %876 = vperm.xlu0 %875, %v176
        %v877 = vpop.permute.xlu0 %876
        %878 = vset.pattern.permute.xlu0 4
        %879 = vperm.xlu0 %878, %v177
        %v880 = vpop.permute.xlu0 %879
        %881 = vset.pattern.permute.xlu0 4
        %882 = vperm.xlu0 %881, %v178
        %v883 = vpop.permute.xlu0 %882
        %884 = vset.pattern.permute.xlu0 4
        %885 = vperm.xlu0 %884, %v179
        %v886 = vpop.permute.xlu0 %885
        %887 = vset.pattern.permute.xlu0 4
        %888 = vperm.xlu0 %887, %v180
        %v889 = vpop.permute.xlu0 %888
        %890 = vset.pattern.permute.xlu0 4
        %891 = vperm.xlu0 %890, %v181
        %v892 = vpop.permute.xlu0 %891
        %893 = vset.pattern.permute.xlu0 4
        %894 = vperm.xlu0 %893, %v182
        %v895 = vpop.permute.xlu0 %894
        %896 = vset.pattern.permute.xlu0 4
        %897 = vperm.xlu0 %896, %v183
        %v898 = vpop.permute.xlu0 %897
        %899 = vset.pattern.permute.xlu0 4
        %900 = vperm.xlu0 %899, %v184
        %v901 = vpop.permute.xlu0 %900
        %902 = vset.pattern.permute.xlu0 4
        %903 = vperm.xlu0 %902, %v185
        %v904 = vpop.permute.xlu0 %903
        %905 = vset.pattern.permute.xlu0 4
        %906 = vperm.xlu0 %905, %v186
        %v907 = vpop.permute.xlu0 %906
        %908 = vset.pattern.permute.xlu0 4
        %909 = vperm.xlu0 %908, %v187
        %v910 = vpop.permute.xlu0 %909
        %911 = vset.pattern.permute.xlu0 4
        %912 = vperm.xlu0 %911, %v188
        %v913 = vpop.permute.xlu0 %912
        %914 = vset.pattern.permute.xlu0 4
        %915 = vperm.xlu0 %914, %v189
        %v916 = vpop.permute.xlu0 %915
        %917 = vset.pattern.permute.xlu0 4
        %918 = vperm.xlu0 %917, %v190
        %v919 = vpop.permute.xlu0 %918
        %920 = vset.pattern.permute.xlu0 4
        %921 = vperm.xlu0 %920, %v191
        %v922 = vpop.permute.xlu0 %921
        %923 = vset.pattern.permute.xlu0 4
        %924 = vperm.xlu0 %923, %v192
        %v925 = vpop.permute.xlu0 %924
        %926 = vset.pattern.permute.xlu0 4
        %927 = vperm.xlu0 %926, %v193
        %v928 = vpop.permute.xlu0 %927
        %929 = vset.pattern.permute.xlu0 4
        %930 = vperm.xlu0 %929, %v194
        %v931 = vpop.permute.xlu0 %930
        %932 = vset.pattern.permute.xlu0 4
        %933 = vperm.xlu0 %932, %v195
        %v934 = vpop.permute.xlu0 %933
        %935 = vset.pattern.permute.xlu0 4
        %936 = vperm.xlu0 %935, %v196
        %v937 = vpop.permute.xlu0 %936
        %938 = vset.pattern.permute.xlu0 4
        %939 = vperm.xlu0 %938, %v197
        %v940 = vpop.permute.xlu0 %939
        %941 = vset.pattern.permute.xlu0 4
        %942 = vperm.xlu0 %941, %v198
        %v943 = vpop.permute.xlu0 %942
        %944 = vset.pattern.permute.xlu0 4
        %945 = vperm.xlu0 %944, %v199
        %v946 = vpop.permute.xlu0 %945
        %947 = vset.pattern.permute.xlu0 4
        %948 = vperm.xlu0 %947, %v200
        %v949 = vpop.permute.xlu0 %948
        %950 = vset.pattern.permute.xlu0 4
        %951 = vperm.xlu0 %950, %v201
        %v952 = vpop.permute.xlu0 %951
        %953 = vset.pattern.permute.xlu0 4
        %954 = vperm.xlu0 %953, %v202
        %v955 = vpop.permute.xlu0 %954
        %956 = vset.pattern.permute.xlu0 4
        %957 = vperm.xlu0 %956, %v203
        %v958 = vpop.permute.xlu0 %957
        %959 = vset.pattern.permute.xlu0 4
        %960 = vperm.xlu0 %959, %v204
        %v961 = vpop.permute.xlu0 %960
        %vm962 = vcmp.eq.s32.totalorder %v865, %v868
        %vm963 = vcmp.eq.s32.totalorder %v865, %v871
        %vm964 = vcmp.eq.s32.totalorder %v865, %v874
        %vm965 = vcmp.eq.s32.totalorder %v865, %v877
        %vm966 = vcmp.eq.s32.totalorder %v865, %v880
        %vm967 = vcmp.eq.s32.totalorder %v865, %v883
        %vm968 = vcmp.eq.s32.totalorder %v865, %v886
        %vm969 = vcmp.eq.s32.totalorder %v865, %v889
        %vm970 = vcmp.eq.s32.totalorder %v865, %v892
        %vm971 = vcmp.eq.s32.totalorder %v865, %v895
        %vm972 = vcmp.eq.s32.totalorder %v865, %v898
        %vm973 = vcmp.eq.s32.totalorder %v865, %v901
        %vm974 = vcmp.eq.s32.totalorder %v865, %v904
        %vm975 = vcmp.eq.s32.totalorder %v865, %v907
        %vm976 = vcmp.eq.s32.totalorder %v865, %v910
        %vm977 = vcmp.eq.s32.totalorder %v865, %v913
        %vm978 = vcmp.eq.s32.totalorder %v865, %v916
        %vm979 = vcmp.eq.s32.totalorder %v865, %v919
        %vm980 = vcmp.eq.s32.totalorder %v865, %v922
        %vm981 = vcmp.eq.s32.totalorder %v865, %v925
        %vm982 = vcmp.eq.s32.totalorder %v865, %v928
        %vm983 = vcmp.eq.s32.totalorder %v865, %v931
        %vm984 = vcmp.eq.s32.totalorder %v865, %v934
        %vm985 = vcmp.eq.s32.totalorder %v865, %v937
        %vm986 = vcmp.eq.s32.totalorder %v865, %v940
        %vm987 = vcmp.eq.s32.totalorder %v865, %v943
        %vm988 = vcmp.eq.s32.totalorder %v865, %v946
        %vm989 = vcmp.eq.s32.totalorder %v865, %v949
        %vm990 = vcmp.eq.s32.totalorder %v865, %v952
        %vm991 = vcmp.eq.s32.totalorder %v865, %v955
        %vm992 = vcmp.eq.s32.totalorder %v865, %v958
        %vm993 = vcmp.eq.s32.totalorder %v865, %v961
        %vm994 = vmor %vm833, %vm962
        %vm995 = vmor %vm834, %vm963
        %vm996 = vmor %vm835, %vm964
        %vm997 = vmor %vm836, %vm965
        %vm998 = vmor %vm837, %vm966
        %vm999 = vmor %vm838, %vm967
        %vm1000 = vmor %vm839, %vm968
        %vm1001 = vmor %vm840, %vm969
        %vm1002 = vmor %vm841, %vm970
        %vm1003 = vmor %vm842, %vm971
        %vm1004 = vmor %vm843, %vm972
        %vm1005 = vmor %vm844, %vm973
        %vm1006 = vmor %vm845, %vm974
        %vm1007 = vmor %vm846, %vm975
        %vm1008 = vmor %vm847, %vm976
        %vm1009 = vmor %vm848, %vm977
        %vm1010 = vmor %vm849, %vm978
        %vm1011 = vmor %vm850, %vm979
        %vm1012 = vmor %vm851, %vm980
        %vm1013 = vmor %vm852, %vm981
        %vm1014 = vmor %vm853, %vm982
        %vm1015 = vmor %vm854, %vm983
        %vm1016 = vmor %vm855, %vm984
        %vm1017 = vmor %vm856, %vm985
        %vm1018 = vmor %vm857, %vm986
        %vm1019 = vmor %vm858, %vm987
        %vm1020 = vmor %vm859, %vm988
        %vm1021 = vmor %vm860, %vm989
        %vm1022 = vmor %vm861, %vm990
        %vm1023 = vmor %vm862, %vm991
        %vm1024 = vmor %vm863, %vm992
        %vm1025 = vmor %vm864, %vm993
        %v1026 = vsub.s32 %v206, 34
        %1027 = vset.pattern.permute.xlu0 5
        %1028 = vperm.xlu0 %1027, %v173
        %v1029 = vpop.permute.xlu0 %1028
        %1030 = vset.pattern.permute.xlu0 5
        %1031 = vperm.xlu0 %1030, %v174
        %v1032 = vpop.permute.xlu0 %1031
        %1033 = vset.pattern.permute.xlu0 5
        %1034 = vperm.xlu0 %1033, %v175
        %v1035 = vpop.permute.xlu0 %1034
        %1036 = vset.pattern.permute.xlu0 5
        %1037 = vperm.xlu0 %1036, %v176
        %v1038 = vpop.permute.xlu0 %1037
        %1039 = vset.pattern.permute.xlu0 5
        %1040 = vperm.xlu0 %1039, %v177
        %v1041 = vpop.permute.xlu0 %1040
        %1042 = vset.pattern.permute.xlu0 5
        %1043 = vperm.xlu0 %1042, %v178
        %v1044 = vpop.permute.xlu0 %1043
        %1045 = vset.pattern.permute.xlu0 5
        %1046 = vperm.xlu0 %1045, %v179
        %v1047 = vpop.permute.xlu0 %1046
        %1048 = vset.pattern.permute.xlu0 5
        %1049 = vperm.xlu0 %1048, %v180
        %v1050 = vpop.permute.xlu0 %1049
        %1051 = vset.pattern.permute.xlu0 5
        %1052 = vperm.xlu0 %1051, %v181
        %v1053 = vpop.permute.xlu0 %1052
        %1054 = vset.pattern.permute.xlu0 5
        %1055 = vperm.xlu0 %1054, %v182
        %v1056 = vpop.permute.xlu0 %1055
        %1057 = vset.pattern.permute.xlu0 5
        %1058 = vperm.xlu0 %1057, %v183
        %v1059 = vpop.permute.xlu0 %1058
        %1060 = vset.pattern.permute.xlu0 5
        %1061 = vperm.xlu0 %1060, %v184
        %v1062 = vpop.permute.xlu0 %1061
        %1063 = vset.pattern.permute.xlu0 5
        %1064 = vperm.xlu0 %1063, %v185
        %v1065 = vpop.permute.xlu0 %1064
        %1066 = vset.pattern.permute.xlu0 5
        %1067 = vperm.xlu0 %1066, %v186
        %v1068 = vpop.permute.xlu0 %1067
        %1069 = vset.pattern.permute.xlu0 5
        %1070 = vperm.xlu0 %1069, %v187
        %v1071 = vpop.permute.xlu0 %1070
        %1072 = vset.pattern.permute.xlu0 5
        %1073 = vperm.xlu0 %1072, %v188
        %v1074 = vpop.permute.xlu0 %1073
        %1075 = vset.pattern.permute.xlu0 5
        %1076 = vperm.xlu0 %1075, %v189
        %v1077 = vpop.permute.xlu0 %1076
        %1078 = vset.pattern.permute.xlu0 5
        %1079 = vperm.xlu0 %1078, %v190
        %v1080 = vpop.permute.xlu0 %1079
        %1081 = vset.pattern.permute.xlu0 5
        %1082 = vperm.xlu0 %1081, %v191
        %v1083 = vpop.permute.xlu0 %1082
        %1084 = vset.pattern.permute.xlu0 5
        %1085 = vperm.xlu0 %1084, %v192
        %v1086 = vpop.permute.xlu0 %1085
        %1087 = vset.pattern.permute.xlu0 5
        %1088 = vperm.xlu0 %1087, %v193
        %v1089 = vpop.permute.xlu0 %1088
        %1090 = vset.pattern.permute.xlu0 5
        %1091 = vperm.xlu0 %1090, %v194
        %v1092 = vpop.permute.xlu0 %1091
        %1093 = vset.pattern.permute.xlu0 5
        %1094 = vperm.xlu0 %1093, %v195
        %v1095 = vpop.permute.xlu0 %1094
        %1096 = vset.pattern.permute.xlu0 5
        %1097 = vperm.xlu0 %1096, %v196
        %v1098 = vpop.permute.xlu0 %1097
        %1099 = vset.pattern.permute.xlu0 5
        %1100 = vperm.xlu0 %1099, %v197
        %v1101 = vpop.permute.xlu0 %1100
        %1102 = vset.pattern.permute.xlu0 5
        %1103 = vperm.xlu0 %1102, %v198
        %v1104 = vpop.permute.xlu0 %1103
        %1105 = vset.pattern.permute.xlu0 5
        %1106 = vperm.xlu0 %1105, %v199
        %v1107 = vpop.permute.xlu0 %1106
        %1108 = vset.pattern.permute.xlu0 5
        %1109 = vperm.xlu0 %1108, %v200
        %v1110 = vpop.permute.xlu0 %1109
        %1111 = vset.pattern.permute.xlu0 5
        %1112 = vperm.xlu0 %1111, %v201
        %v1113 = vpop.permute.xlu0 %1112
        %1114 = vset.pattern.permute.xlu0 5
        %1115 = vperm.xlu0 %1114, %v202
        %v1116 = vpop.permute.xlu0 %1115
        %1117 = vset.pattern.permute.xlu0 5
        %1118 = vperm.xlu0 %1117, %v203
        %v1119 = vpop.permute.xlu0 %1118
        %1120 = vset.pattern.permute.xlu0 5
        %1121 = vperm.xlu0 %1120, %v204
        %v1122 = vpop.permute.xlu0 %1121
        %vm1123 = vcmp.eq.s32.totalorder %v1026, %v1029
        %vm1124 = vcmp.eq.s32.totalorder %v1026, %v1032
        %vm1125 = vcmp.eq.s32.totalorder %v1026, %v1035
        %vm1126 = vcmp.eq.s32.totalorder %v1026, %v1038
        %vm1127 = vcmp.eq.s32.totalorder %v1026, %v1041
        %vm1128 = vcmp.eq.s32.totalorder %v1026, %v1044
        %vm1129 = vcmp.eq.s32.totalorder %v1026, %v1047
        %vm1130 = vcmp.eq.s32.totalorder %v1026, %v1050
        %vm1131 = vcmp.eq.s32.totalorder %v1026, %v1053
        %vm1132 = vcmp.eq.s32.totalorder %v1026, %v1056
        %vm1133 = vcmp.eq.s32.totalorder %v1026, %v1059
        %vm1134 = vcmp.eq.s32.totalorder %v1026, %v1062
        %vm1135 = vcmp.eq.s32.totalorder %v1026, %v1065
        %vm1136 = vcmp.eq.s32.totalorder %v1026, %v1068
        %vm1137 = vcmp.eq.s32.totalorder %v1026, %v1071
        %vm1138 = vcmp.eq.s32.totalorder %v1026, %v1074
        %vm1139 = vcmp.eq.s32.totalorder %v1026, %v1077
        %vm1140 = vcmp.eq.s32.totalorder %v1026, %v1080
        %vm1141 = vcmp.eq.s32.totalorder %v1026, %v1083
        %vm1142 = vcmp.eq.s32.totalorder %v1026, %v1086
        %vm1143 = vcmp.eq.s32.totalorder %v1026, %v1089
        %vm1144 = vcmp.eq.s32.totalorder %v1026, %v1092
        %vm1145 = vcmp.eq.s32.totalorder %v1026, %v1095
        %vm1146 = vcmp.eq.s32.totalorder %v1026, %v1098
        %vm1147 = vcmp.eq.s32.totalorder %v1026, %v1101
        %vm1148 = vcmp.eq.s32.totalorder %v1026, %v1104
        %vm1149 = vcmp.eq.s32.totalorder %v1026, %v1107
        %vm1150 = vcmp.eq.s32.totalorder %v1026, %v1110
        %vm1151 = vcmp.eq.s32.totalorder %v1026, %v1113
        %vm1152 = vcmp.eq.s32.totalorder %v1026, %v1116
        %vm1153 = vcmp.eq.s32.totalorder %v1026, %v1119
        %vm1154 = vcmp.eq.s32.totalorder %v1026, %v1122
        %vm1155 = vmor %vm994, %vm1123
        %vm1156 = vmor %vm995, %vm1124
        %vm1157 = vmor %vm996, %vm1125
        %vm1158 = vmor %vm997, %vm1126
        %vm1159 = vmor %vm998, %vm1127
        %vm1160 = vmor %vm999, %vm1128
        %vm1161 = vmor %vm1000, %vm1129
        %vm1162 = vmor %vm1001, %vm1130
        %vm1163 = vmor %vm1002, %vm1131
        %vm1164 = vmor %vm1003, %vm1132
        %vm1165 = vmor %vm1004, %vm1133
        %vm1166 = vmor %vm1005, %vm1134
        %vm1167 = vmor %vm1006, %vm1135
        %vm1168 = vmor %vm1007, %vm1136
        %vm1169 = vmor %vm1008, %vm1137
        %vm1170 = vmor %vm1009, %vm1138
        %vm1171 = vmor %vm1010, %vm1139
        %vm1172 = vmor %vm1011, %vm1140
        %vm1173 = vmor %vm1012, %vm1141
        %vm1174 = vmor %vm1013, %vm1142
        %vm1175 = vmor %vm1014, %vm1143
        %vm1176 = vmor %vm1015, %vm1144
        %vm1177 = vmor %vm1016, %vm1145
        %vm1178 = vmor %vm1017, %vm1146
        %vm1179 = vmor %vm1018, %vm1147
        %vm1180 = vmor %vm1019, %vm1148
        %vm1181 = vmor %vm1020, %vm1149
        %vm1182 = vmor %vm1021, %vm1150
        %vm1183 = vmor %vm1022, %vm1151
        %vm1184 = vmor %vm1023, %vm1152
        %vm1185 = vmor %vm1024, %vm1153
        %vm1186 = vmor %vm1025, %vm1154
        %v1187 = vsub.s32 %v206, 40
        %1188 = vset.pattern.permute.xlu0 6
        %1189 = vperm.xlu0 %1188, %v173
        %v1190 = vpop.permute.xlu0 %1189
        %1191 = vset.pattern.permute.xlu0 6
        %1192 = vperm.xlu0 %1191, %v174
        %v1193 = vpop.permute.xlu0 %1192
        %1194 = vset.pattern.permute.xlu0 6
        %1195 = vperm.xlu0 %1194, %v175
        %v1196 = vpop.permute.xlu0 %1195
        %1197 = vset.pattern.permute.xlu0 6
        %1198 = vperm.xlu0 %1197, %v176
        %v1199 = vpop.permute.xlu0 %1198
        %1200 = vset.pattern.permute.xlu0 6
        %1201 = vperm.xlu0 %1200, %v177
        %v1202 = vpop.permute.xlu0 %1201
        %1203 = vset.pattern.permute.xlu0 6
        %1204 = vperm.xlu0 %1203, %v178
        %v1205 = vpop.permute.xlu0 %1204
        %1206 = vset.pattern.permute.xlu0 6
        %1207 = vperm.xlu0 %1206, %v179
        %v1208 = vpop.permute.xlu0 %1207
        %1209 = vset.pattern.permute.xlu0 6
        %1210 = vperm.xlu0 %1209, %v180
        %v1211 = vpop.permute.xlu0 %1210
        %1212 = vset.pattern.permute.xlu0 6
        %1213 = vperm.xlu0 %1212, %v181
        %v1214 = vpop.permute.xlu0 %1213
        %1215 = vset.pattern.permute.xlu0 6
        %1216 = vperm.xlu0 %1215, %v182
        %v1217 = vpop.permute.xlu0 %1216
        %1218 = vset.pattern.permute.xlu0 6
        %1219 = vperm.xlu0 %1218, %v183
        %v1220 = vpop.permute.xlu0 %1219
        %1221 = vset.pattern.permute.xlu0 6
        %1222 = vperm.xlu0 %1221, %v184
        %v1223 = vpop.permute.xlu0 %1222
        %1224 = vset.pattern.permute.xlu0 6
        %1225 = vperm.xlu0 %1224, %v185
        %v1226 = vpop.permute.xlu0 %1225
        %1227 = vset.pattern.permute.xlu0 6
        %1228 = vperm.xlu0 %1227, %v186
        %v1229 = vpop.permute.xlu0 %1228
        %1230 = vset.pattern.permute.xlu0 6
        %1231 = vperm.xlu0 %1230, %v187
        %v1232 = vpop.permute.xlu0 %1231
        %1233 = vset.pattern.permute.xlu0 6
        %1234 = vperm.xlu0 %1233, %v188
        %v1235 = vpop.permute.xlu0 %1234
        %1236 = vset.pattern.permute.xlu0 6
        %1237 = vperm.xlu0 %1236, %v189
        %v1238 = vpop.permute.xlu0 %1237
        %1239 = vset.pattern.permute.xlu0 6
        %1240 = vperm.xlu0 %1239, %v190
        %v1241 = vpop.permute.xlu0 %1240
        %1242 = vset.pattern.permute.xlu0 6
        %1243 = vperm.xlu0 %1242, %v191
        %v1244 = vpop.permute.xlu0 %1243
        %1245 = vset.pattern.permute.xlu0 6
        %1246 = vperm.xlu0 %1245, %v192
        %v1247 = vpop.permute.xlu0 %1246
        %1248 = vset.pattern.permute.xlu0 6
        %1249 = vperm.xlu0 %1248, %v193
        %v1250 = vpop.permute.xlu0 %1249
        %1251 = vset.pattern.permute.xlu0 6
        %1252 = vperm.xlu0 %1251, %v194
        %v1253 = vpop.permute.xlu0 %1252
        %1254 = vset.pattern.permute.xlu0 6
        %1255 = vperm.xlu0 %1254, %v195
        %v1256 = vpop.permute.xlu0 %1255
        %1257 = vset.pattern.permute.xlu0 6
        %1258 = vperm.xlu0 %1257, %v196
        %v1259 = vpop.permute.xlu0 %1258
        %1260 = vset.pattern.permute.xlu0 6
        %1261 = vperm.xlu0 %1260, %v197
        %v1262 = vpop.permute.xlu0 %1261
        %1263 = vset.pattern.permute.xlu0 6
        %1264 = vperm.xlu0 %1263, %v198
        %v1265 = vpop.permute.xlu0 %1264
        %1266 = vset.pattern.permute.xlu0 6
        %1267 = vperm.xlu0 %1266, %v199
        %v1268 = vpop.permute.xlu0 %1267
        %1269 = vset.pattern.permute.xlu0 6
        %1270 = vperm.xlu0 %1269, %v200
        %v1271 = vpop.permute.xlu0 %1270
        %1272 = vset.pattern.permute.xlu0 6
        %1273 = vperm.xlu0 %1272, %v201
        %v1274 = vpop.permute.xlu0 %1273
        %1275 = vset.pattern.permute.xlu0 6
        %1276 = vperm.xlu0 %1275, %v202
        %v1277 = vpop.permute.xlu0 %1276
        %1278 = vset.pattern.permute.xlu0 6
        %1279 = vperm.xlu0 %1278, %v203
        %v1280 = vpop.permute.xlu0 %1279
        %1281 = vset.pattern.permute.xlu0 6
        %1282 = vperm.xlu0 %1281, %v204
        %v1283 = vpop.permute.xlu0 %1282
        %vm1284 = vcmp.eq.s32.totalorder %v1187, %v1190
        %vm1285 = vcmp.eq.s32.totalorder %v1187, %v1193
        %vm1286 = vcmp.eq.s32.totalorder %v1187, %v1196
        %vm1287 = vcmp.eq.s32.totalorder %v1187, %v1199
        %vm1288 = vcmp.eq.s32.totalorder %v1187, %v1202
        %vm1289 = vcmp.eq.s32.totalorder %v1187, %v1205
        %vm1290 = vcmp.eq.s32.totalorder %v1187, %v1208
        %vm1291 = vcmp.eq.s32.totalorder %v1187, %v1211
        %vm1292 = vcmp.eq.s32.totalorder %v1187, %v1214
        %vm1293 = vcmp.eq.s32.totalorder %v1187, %v1217
        %vm1294 = vcmp.eq.s32.totalorder %v1187, %v1220
        %vm1295 = vcmp.eq.s32.totalorder %v1187, %v1223
        %vm1296 = vcmp.eq.s32.totalorder %v1187, %v1226
        %vm1297 = vcmp.eq.s32.totalorder %v1187, %v1229
        %vm1298 = vcmp.eq.s32.totalorder %v1187, %v1232
        %vm1299 = vcmp.eq.s32.totalorder %v1187, %v1235
        %vm1300 = vcmp.eq.s32.totalorder %v1187, %v1238
        %vm1301 = vcmp.eq.s32.totalorder %v1187, %v1241
        %vm1302 = vcmp.eq.s32.totalorder %v1187, %v1244
        %vm1303 = vcmp.eq.s32.totalorder %v1187, %v1247
        %vm1304 = vcmp.eq.s32.totalorder %v1187, %v1250
        %vm1305 = vcmp.eq.s32.totalorder %v1187, %v1253
        %vm1306 = vcmp.eq.s32.totalorder %v1187, %v1256
        %vm1307 = vcmp.eq.s32.totalorder %v1187, %v1259
        %vm1308 = vcmp.eq.s32.totalorder %v1187, %v1262
        %vm1309 = vcmp.eq.s32.totalorder %v1187, %v1265
        %vm1310 = vcmp.eq.s32.totalorder %v1187, %v1268
        %vm1311 = vcmp.eq.s32.totalorder %v1187, %v1271
        %vm1312 = vcmp.eq.s32.totalorder %v1187, %v1274
        %vm1313 = vcmp.eq.s32.totalorder %v1187, %v1277
        %vm1314 = vcmp.eq.s32.totalorder %v1187, %v1280
        %vm1315 = vcmp.eq.s32.totalorder %v1187, %v1283
        %vm1316 = vmor %vm1155, %vm1284
        %vm1317 = vmor %vm1156, %vm1285
        %vm1318 = vmor %vm1157, %vm1286
        %vm1319 = vmor %vm1158, %vm1287
        %vm1320 = vmor %vm1159, %vm1288
        %vm1321 = vmor %vm1160, %vm1289
        %vm1322 = vmor %vm1161, %vm1290
        %vm1323 = vmor %vm1162, %vm1291
        %vm1324 = vmor %vm1163, %vm1292
        %vm1325 = vmor %vm1164, %vm1293
        %vm1326 = vmor %vm1165, %vm1294
        %vm1327 = vmor %vm1166, %vm1295
        %vm1328 = vmor %vm1167, %vm1296
        %vm1329 = vmor %vm1168, %vm1297
        %vm1330 = vmor %vm1169, %vm1298
        %vm1331 = vmor %vm1170, %vm1299
        %vm1332 = vmor %vm1171, %vm1300
        %vm1333 = vmor %vm1172, %vm1301
        %vm1334 = vmor %vm1173, %vm1302
        %vm1335 = vmor %vm1174, %vm1303
        %vm1336 = vmor %vm1175, %vm1304
        %vm1337 = vmor %vm1176, %vm1305
        %vm1338 = vmor %vm1177, %vm1306
        %vm1339 = vmor %vm1178, %vm1307
        %vm1340 = vmor %vm1179, %vm1308
        %vm1341 = vmor %vm1180, %vm1309
        %vm1342 = vmor %vm1181, %vm1310
        %vm1343 = vmor %vm1182, %vm1311
        %vm1344 = vmor %vm1183, %vm1312
        %vm1345 = vmor %vm1184, %vm1313
        %vm1346 = vmor %vm1185, %vm1314
        %vm1347 = vmor %vm1186, %vm1315
        %v1348 = vsub.s32 %v206, 46
        %1349 = vset.pattern.permute.xlu0 7
        %1350 = vperm.xlu0 %1349, %v173
        %v1351 = vpop.permute.xlu0 %1350
        %1352 = vset.pattern.permute.xlu0 7
        %1353 = vperm.xlu0 %1352, %v174
        %v1354 = vpop.permute.xlu0 %1353
        %1355 = vset.pattern.permute.xlu0 7
        %1356 = vperm.xlu0 %1355, %v175
        %v1357 = vpop.permute.xlu0 %1356
        %1358 = vset.pattern.permute.xlu0 7
        %1359 = vperm.xlu0 %1358, %v176
        %v1360 = vpop.permute.xlu0 %1359
        %1361 = vset.pattern.permute.xlu0 7
        %1362 = vperm.xlu0 %1361, %v177
        %v1363 = vpop.permute.xlu0 %1362
        %1364 = vset.pattern.permute.xlu0 7
        %1365 = vperm.xlu0 %1364, %v178
        %v1366 = vpop.permute.xlu0 %1365
        %1367 = vset.pattern.permute.xlu0 7
        %1368 = vperm.xlu0 %1367, %v179
        %v1369 = vpop.permute.xlu0 %1368
        %1370 = vset.pattern.permute.xlu0 7
        %1371 = vperm.xlu0 %1370, %v180
        %v1372 = vpop.permute.xlu0 %1371
        %1373 = vset.pattern.permute.xlu0 7
        %1374 = vperm.xlu0 %1373, %v181
        %v1375 = vpop.permute.xlu0 %1374
        %1376 = vset.pattern.permute.xlu0 7
        %1377 = vperm.xlu0 %1376, %v182
        %v1378 = vpop.permute.xlu0 %1377
        %1379 = vset.pattern.permute.xlu0 7
        %1380 = vperm.xlu0 %1379, %v183
        %v1381 = vpop.permute.xlu0 %1380
        %1382 = vset.pattern.permute.xlu0 7
        %1383 = vperm.xlu0 %1382, %v184
        %v1384 = vpop.permute.xlu0 %1383
        %1385 = vset.pattern.permute.xlu0 7
        %1386 = vperm.xlu0 %1385, %v185
        %v1387 = vpop.permute.xlu0 %1386
        %1388 = vset.pattern.permute.xlu0 7
        %1389 = vperm.xlu0 %1388, %v186
        %v1390 = vpop.permute.xlu0 %1389
        %1391 = vset.pattern.permute.xlu0 7
        %1392 = vperm.xlu0 %1391, %v187
        %v1393 = vpop.permute.xlu0 %1392
        %1394 = vset.pattern.permute.xlu0 7
        %1395 = vperm.xlu0 %1394, %v188
        %v1396 = vpop.permute.xlu0 %1395
        %1397 = vset.pattern.permute.xlu0 7
        %1398 = vperm.xlu0 %1397, %v189
        %v1399 = vpop.permute.xlu0 %1398
        %1400 = vset.pattern.permute.xlu0 7
        %1401 = vperm.xlu0 %1400, %v190
        %v1402 = vpop.permute.xlu0 %1401
        %1403 = vset.pattern.permute.xlu0 7
        %1404 = vperm.xlu0 %1403, %v191
        %v1405 = vpop.permute.xlu0 %1404
        %1406 = vset.pattern.permute.xlu0 7
        %1407 = vperm.xlu0 %1406, %v192
        %v1408 = vpop.permute.xlu0 %1407
        %1409 = vset.pattern.permute.xlu0 7
        %1410 = vperm.xlu0 %1409, %v193
        %v1411 = vpop.permute.xlu0 %1410
        %1412 = vset.pattern.permute.xlu0 7
        %1413 = vperm.xlu0 %1412, %v194
        %v1414 = vpop.permute.xlu0 %1413
        %1415 = vset.pattern.permute.xlu0 7
        %1416 = vperm.xlu0 %1415, %v195
        %v1417 = vpop.permute.xlu0 %1416
        %1418 = vset.pattern.permute.xlu0 7
        %1419 = vperm.xlu0 %1418, %v196
        %v1420 = vpop.permute.xlu0 %1419
        %1421 = vset.pattern.permute.xlu0 7
        %1422 = vperm.xlu0 %1421, %v197
        %v1423 = vpop.permute.xlu0 %1422
        %1424 = vset.pattern.permute.xlu0 7
        %1425 = vperm.xlu0 %1424, %v198
        %v1426 = vpop.permute.xlu0 %1425
        %1427 = vset.pattern.permute.xlu0 7
        %1428 = vperm.xlu0 %1427, %v199
        %v1429 = vpop.permute.xlu0 %1428
        %1430 = vset.pattern.permute.xlu0 7
        %1431 = vperm.xlu0 %1430, %v200
        %v1432 = vpop.permute.xlu0 %1431
        %1433 = vset.pattern.permute.xlu0 7
        %1434 = vperm.xlu0 %1433, %v201
        %v1435 = vpop.permute.xlu0 %1434
        %1436 = vset.pattern.permute.xlu0 7
        %1437 = vperm.xlu0 %1436, %v202
        %v1438 = vpop.permute.xlu0 %1437
        %1439 = vset.pattern.permute.xlu0 7
        %1440 = vperm.xlu0 %1439, %v203
        %v1441 = vpop.permute.xlu0 %1440
        %1442 = vset.pattern.permute.xlu0 7
        %1443 = vperm.xlu0 %1442, %v204
        %v1444 = vpop.permute.xlu0 %1443
        %vm1445 = vcmp.eq.s32.totalorder %v1348, %v1351
        %vm1446 = vcmp.eq.s32.totalorder %v1348, %v1354
        %vm1447 = vcmp.eq.s32.totalorder %v1348, %v1357
        %vm1448 = vcmp.eq.s32.totalorder %v1348, %v1360
        %vm1449 = vcmp.eq.s32.totalorder %v1348, %v1363
        %vm1450 = vcmp.eq.s32.totalorder %v1348, %v1366
        %vm1451 = vcmp.eq.s32.totalorder %v1348, %v1369
        %vm1452 = vcmp.eq.s32.totalorder %v1348, %v1372
        %vm1453 = vcmp.eq.s32.totalorder %v1348, %v1375
        %vm1454 = vcmp.eq.s32.totalorder %v1348, %v1378
        %vm1455 = vcmp.eq.s32.totalorder %v1348, %v1381
        %vm1456 = vcmp.eq.s32.totalorder %v1348, %v1384
        %vm1457 = vcmp.eq.s32.totalorder %v1348, %v1387
        %vm1458 = vcmp.eq.s32.totalorder %v1348, %v1390
        %vm1459 = vcmp.eq.s32.totalorder %v1348, %v1393
        %vm1460 = vcmp.eq.s32.totalorder %v1348, %v1396
        %vm1461 = vcmp.eq.s32.totalorder %v1348, %v1399
        %vm1462 = vcmp.eq.s32.totalorder %v1348, %v1402
        %vm1463 = vcmp.eq.s32.totalorder %v1348, %v1405
        %vm1464 = vcmp.eq.s32.totalorder %v1348, %v1408
        %vm1465 = vcmp.eq.s32.totalorder %v1348, %v1411
        %vm1466 = vcmp.eq.s32.totalorder %v1348, %v1414
        %vm1467 = vcmp.eq.s32.totalorder %v1348, %v1417
        %vm1468 = vcmp.eq.s32.totalorder %v1348, %v1420
        %vm1469 = vcmp.eq.s32.totalorder %v1348, %v1423
        %vm1470 = vcmp.eq.s32.totalorder %v1348, %v1426
        %vm1471 = vcmp.eq.s32.totalorder %v1348, %v1429
        %vm1472 = vcmp.eq.s32.totalorder %v1348, %v1432
        %vm1473 = vcmp.eq.s32.totalorder %v1348, %v1435
        %vm1474 = vcmp.eq.s32.totalorder %v1348, %v1438
        %vm1475 = vcmp.eq.s32.totalorder %v1348, %v1441
        %vm1476 = vcmp.eq.s32.totalorder %v1348, %v1444
        %vm1477 = vmor %vm1316, %vm1445
        %vm1478 = vmor %vm1317, %vm1446
        %vm1479 = vmor %vm1318, %vm1447
        %vm1480 = vmor %vm1319, %vm1448
        %vm1481 = vmor %vm1320, %vm1449
        %vm1482 = vmor %vm1321, %vm1450
        %vm1483 = vmor %vm1322, %vm1451
        %vm1484 = vmor %vm1323, %vm1452
        %vm1485 = vmor %vm1324, %vm1453
        %vm1486 = vmor %vm1325, %vm1454
        %vm1487 = vmor %vm1326, %vm1455
        %vm1488 = vmor %vm1327, %vm1456
        %vm1489 = vmor %vm1328, %vm1457
        %vm1490 = vmor %vm1329, %vm1458
        %vm1491 = vmor %vm1330, %vm1459
        %vm1492 = vmor %vm1331, %vm1460
        %vm1493 = vmor %vm1332, %vm1461
        %vm1494 = vmor %vm1333, %vm1462
        %vm1495 = vmor %vm1334, %vm1463
        %vm1496 = vmor %vm1335, %vm1464
        %vm1497 = vmor %vm1336, %vm1465
        %vm1498 = vmor %vm1337, %vm1466
        %vm1499 = vmor %vm1338, %vm1467
        %vm1500 = vmor %vm1339, %vm1468
        %vm1501 = vmor %vm1340, %vm1469
        %vm1502 = vmor %vm1341, %vm1470
        %vm1503 = vmor %vm1342, %vm1471
        %vm1504 = vmor %vm1343, %vm1472
        %vm1505 = vmor %vm1344, %vm1473
        %vm1506 = vmor %vm1345, %vm1474
        %vm1507 = vmor %vm1346, %vm1475
        %vm1508 = vmor %vm1347, %vm1476
        %v1509 = vsub.s32 %v206, 48
        %1510 = vset.pattern.permute.xlu0 8
        %1511 = vperm.xlu0 %1510, %v173
        %v1512 = vpop.permute.xlu0 %1511
        %1513 = vset.pattern.permute.xlu0 8
        %1514 = vperm.xlu0 %1513, %v174
        %v1515 = vpop.permute.xlu0 %1514
        %1516 = vset.pattern.permute.xlu0 8
        %1517 = vperm.xlu0 %1516, %v175
        %v1518 = vpop.permute.xlu0 %1517
        %1519 = vset.pattern.permute.xlu0 8
        %1520 = vperm.xlu0 %1519, %v176
        %v1521 = vpop.permute.xlu0 %1520
        %1522 = vset.pattern.permute.xlu0 8
        %1523 = vperm.xlu0 %1522, %v177
        %v1524 = vpop.permute.xlu0 %1523
        %1525 = vset.pattern.permute.xlu0 8
        %1526 = vperm.xlu0 %1525, %v178
        %v1527 = vpop.permute.xlu0 %1526
        %1528 = vset.pattern.permute.xlu0 8
        %1529 = vperm.xlu0 %1528, %v179
        %v1530 = vpop.permute.xlu0 %1529
        %1531 = vset.pattern.permute.xlu0 8
        %1532 = vperm.xlu0 %1531, %v180
        %v1533 = vpop.permute.xlu0 %1532
        %1534 = vset.pattern.permute.xlu0 8
        %1535 = vperm.xlu0 %1534, %v181
        %v1536 = vpop.permute.xlu0 %1535
        %1537 = vset.pattern.permute.xlu0 8
        %1538 = vperm.xlu0 %1537, %v182
        %v1539 = vpop.permute.xlu0 %1538
        %1540 = vset.pattern.permute.xlu0 8
        %1541 = vperm.xlu0 %1540, %v183
        %v1542 = vpop.permute.xlu0 %1541
        %1543 = vset.pattern.permute.xlu0 8
        %1544 = vperm.xlu0 %1543, %v184
        %v1545 = vpop.permute.xlu0 %1544
        %1546 = vset.pattern.permute.xlu0 8
        %1547 = vperm.xlu0 %1546, %v185
        %v1548 = vpop.permute.xlu0 %1547
        %1549 = vset.pattern.permute.xlu0 8
        %1550 = vperm.xlu0 %1549, %v186
        %v1551 = vpop.permute.xlu0 %1550
        %1552 = vset.pattern.permute.xlu0 8
        %1553 = vperm.xlu0 %1552, %v187
        %v1554 = vpop.permute.xlu0 %1553
        %1555 = vset.pattern.permute.xlu0 8
        %1556 = vperm.xlu0 %1555, %v188
        %v1557 = vpop.permute.xlu0 %1556
        %1558 = vset.pattern.permute.xlu0 8
        %1559 = vperm.xlu0 %1558, %v189
        %v1560 = vpop.permute.xlu0 %1559
        %1561 = vset.pattern.permute.xlu0 8
        %1562 = vperm.xlu0 %1561, %v190
        %v1563 = vpop.permute.xlu0 %1562
        %1564 = vset.pattern.permute.xlu0 8
        %1565 = vperm.xlu0 %1564, %v191
        %v1566 = vpop.permute.xlu0 %1565
        %1567 = vset.pattern.permute.xlu0 8
        %1568 = vperm.xlu0 %1567, %v192
        %v1569 = vpop.permute.xlu0 %1568
        %1570 = vset.pattern.permute.xlu0 8
        %1571 = vperm.xlu0 %1570, %v193
        %v1572 = vpop.permute.xlu0 %1571
        %1573 = vset.pattern.permute.xlu0 8
        %1574 = vperm.xlu0 %1573, %v194
        %v1575 = vpop.permute.xlu0 %1574
        %1576 = vset.pattern.permute.xlu0 8
        %1577 = vperm.xlu0 %1576, %v195
        %v1578 = vpop.permute.xlu0 %1577
        %1579 = vset.pattern.permute.xlu0 8
        %1580 = vperm.xlu0 %1579, %v196
        %v1581 = vpop.permute.xlu0 %1580
        %1582 = vset.pattern.permute.xlu0 8
        %1583 = vperm.xlu0 %1582, %v197
        %v1584 = vpop.permute.xlu0 %1583
        %1585 = vset.pattern.permute.xlu0 8
        %1586 = vperm.xlu0 %1585, %v198
        %v1587 = vpop.permute.xlu0 %1586
        %1588 = vset.pattern.permute.xlu0 8
        %1589 = vperm.xlu0 %1588, %v199
        %v1590 = vpop.permute.xlu0 %1589
        %1591 = vset.pattern.permute.xlu0 8
        %1592 = vperm.xlu0 %1591, %v200
        %v1593 = vpop.permute.xlu0 %1592
        %1594 = vset.pattern.permute.xlu0 8
        %1595 = vperm.xlu0 %1594, %v201
        %v1596 = vpop.permute.xlu0 %1595
        %1597 = vset.pattern.permute.xlu0 8
        %1598 = vperm.xlu0 %1597, %v202
        %v1599 = vpop.permute.xlu0 %1598
        %1600 = vset.pattern.permute.xlu0 8
        %1601 = vperm.xlu0 %1600, %v203
        %v1602 = vpop.permute.xlu0 %1601
        %1603 = vset.pattern.permute.xlu0 8
        %1604 = vperm.xlu0 %1603, %v204
        %v1605 = vpop.permute.xlu0 %1604
        %vm1606 = vcmp.eq.s32.totalorder %v1509, %v1512
        %vm1607 = vcmp.eq.s32.totalorder %v1509, %v1515
        %vm1608 = vcmp.eq.s32.totalorder %v1509, %v1518
        %vm1609 = vcmp.eq.s32.totalorder %v1509, %v1521
        %vm1610 = vcmp.eq.s32.totalorder %v1509, %v1524
        %vm1611 = vcmp.eq.s32.totalorder %v1509, %v1527
        %vm1612 = vcmp.eq.s32.totalorder %v1509, %v1530
        %vm1613 = vcmp.eq.s32.totalorder %v1509, %v1533
        %vm1614 = vcmp.eq.s32.totalorder %v1509, %v1536
        %vm1615 = vcmp.eq.s32.totalorder %v1509, %v1539
        %vm1616 = vcmp.eq.s32.totalorder %v1509, %v1542
        %vm1617 = vcmp.eq.s32.totalorder %v1509, %v1545
        %vm1618 = vcmp.eq.s32.totalorder %v1509, %v1548
        %vm1619 = vcmp.eq.s32.totalorder %v1509, %v1551
        %vm1620 = vcmp.eq.s32.totalorder %v1509, %v1554
        %vm1621 = vcmp.eq.s32.totalorder %v1509, %v1557
        %vm1622 = vcmp.eq.s32.totalorder %v1509, %v1560
        %vm1623 = vcmp.eq.s32.totalorder %v1509, %v1563
        %vm1624 = vcmp.eq.s32.totalorder %v1509, %v1566
        %vm1625 = vcmp.eq.s32.totalorder %v1509, %v1569
        %vm1626 = vcmp.eq.s32.totalorder %v1509, %v1572
        %vm1627 = vcmp.eq.s32.totalorder %v1509, %v1575
        %vm1628 = vcmp.eq.s32.totalorder %v1509, %v1578
        %vm1629 = vcmp.eq.s32.totalorder %v1509, %v1581
        %vm1630 = vcmp.eq.s32.totalorder %v1509, %v1584
        %vm1631 = vcmp.eq.s32.totalorder %v1509, %v1587
        %vm1632 = vcmp.eq.s32.totalorder %v1509, %v1590
        %vm1633 = vcmp.eq.s32.totalorder %v1509, %v1593
        %vm1634 = vcmp.eq.s32.totalorder %v1509, %v1596
        %vm1635 = vcmp.eq.s32.totalorder %v1509, %v1599
        %vm1636 = vcmp.eq.s32.totalorder %v1509, %v1602
        %vm1637 = vcmp.eq.s32.totalorder %v1509, %v1605
        %vm1638 = vmor %vm1477, %vm1606
        %vm1639 = vmor %vm1478, %vm1607
        %vm1640 = vmor %vm1479, %vm1608
        %vm1641 = vmor %vm1480, %vm1609
        %vm1642 = vmor %vm1481, %vm1610
        %vm1643 = vmor %vm1482, %vm1611
        %vm1644 = vmor %vm1483, %vm1612
        %vm1645 = vmor %vm1484, %vm1613
        %vm1646 = vmor %vm1485, %vm1614
        %vm1647 = vmor %vm1486, %vm1615
        %vm1648 = vmor %vm1487, %vm1616
        %vm1649 = vmor %vm1488, %vm1617
        %vm1650 = vmor %vm1489, %vm1618
        %vm1651 = vmor %vm1490, %vm1619
        %vm1652 = vmor %vm1491, %vm1620
        %vm1653 = vmor %vm1492, %vm1621
        %vm1654 = vmor %vm1493, %vm1622
        %vm1655 = vmor %vm1494, %vm1623
        %vm1656 = vmor %vm1495, %vm1624
        %vm1657 = vmor %vm1496, %vm1625
        %vm1658 = vmor %vm1497, %vm1626
        %vm1659 = vmor %vm1498, %vm1627
        %vm1660 = vmor %vm1499, %vm1628
        %vm1661 = vmor %vm1500, %vm1629
        %vm1662 = vmor %vm1501, %vm1630
        %vm1663 = vmor %vm1502, %vm1631
        %vm1664 = vmor %vm1503, %vm1632
        %vm1665 = vmor %vm1504, %vm1633
        %vm1666 = vmor %vm1505, %vm1634
        %vm1667 = vmor %vm1506, %vm1635
        %vm1668 = vmor %vm1507, %vm1636
        %vm1669 = vmor %vm1508, %vm1637
        %v1670 = vsel %vm1638, 1, 0
        %v1671 = vsel %vm1639, 1, 0
        %v1672 = vsel %vm1640, 1, 0
        %v1673 = vsel %vm1641, 1, 0
        %v1674 = vsel %vm1642, 1, 0
        %v1675 = vsel %vm1643, 1, 0
        %v1676 = vsel %vm1644, 1, 0
        %v1677 = vsel %vm1645, 1, 0
        %v1678 = vsel %vm1646, 1, 0
        %v1679 = vsel %vm1647, 1, 0
        %v1680 = vsel %vm1648, 1, 0
        %v1681 = vsel %vm1649, 1, 0
        %v1682 = vsel %vm1650, 1, 0
        %v1683 = vsel %vm1651, 1, 0
        %v1684 = vsel %vm1652, 1, 0
        %v1685 = vsel %vm1653, 1, 0
        %v1686 = vsel %vm1654, 1, 0
        %v1687 = vsel %vm1655, 1, 0
        %v1688 = vsel %vm1656, 1, 0
        %v1689 = vsel %vm1657, 1, 0
        %v1690 = vsel %vm1658, 1, 0
        %v1691 = vsel %vm1659, 1, 0
        %v1692 = vsel %vm1660, 1, 0
        %v1693 = vsel %vm1661, 1, 0
        %v1694 = vsel %vm1662, 1, 0
        %v1695 = vsel %vm1663, 1, 0
        %v1696 = vsel %vm1664, 1, 0
        %v1697 = vsel %vm1665, 1, 0
        %v1698 = vsel %vm1666, 1, 0
        %v1699 = vsel %vm1667, 1, 0
        %v1700 = vsel %vm1668, 1, 0
        %v1701 = vsel %vm1669, 1, 0
        %v1702 = vcvt.s32.f32 %v1670
        %v1703 = vcvt.s32.f32 %v1671
        %v1704 = vcvt.s32.f32 %v1672
        %v1705 = vcvt.s32.f32 %v1673
        %v1706 = vcvt.s32.f32 %v1674
        %v1707 = vcvt.s32.f32 %v1675
        %v1708 = vcvt.s32.f32 %v1676
        %v1709 = vcvt.s32.f32 %v1677
        %v1710 = vcvt.s32.f32 %v1678
        %v1711 = vcvt.s32.f32 %v1679
        %v1712 = vcvt.s32.f32 %v1680
        %v1713 = vcvt.s32.f32 %v1681
        %v1714 = vcvt.s32.f32 %v1682
        %v1715 = vcvt.s32.f32 %v1683
        %v1716 = vcvt.s32.f32 %v1684
        %v1717 = vcvt.s32.f32 %v1685
        %v1718 = vcvt.s32.f32 %v1686
        %v1719 = vcvt.s32.f32 %v1687
        %v1720 = vcvt.s32.f32 %v1688
        %v1721 = vcvt.s32.f32 %v1689
        %v1722 = vcvt.s32.f32 %v1690
        %v1723 = vcvt.s32.f32 %v1691
        %v1724 = vcvt.s32.f32 %v1692
        %v1725 = vcvt.s32.f32 %v1693
        %v1726 = vcvt.s32.f32 %v1694
        %v1727 = vcvt.s32.f32 %v1695
        %v1728 = vcvt.s32.f32 %v1696
        %v1729 = vcvt.s32.f32 %v1697
        %v1730 = vcvt.s32.f32 %v1698
        %v1731 = vcvt.s32.f32 %v1699
        %v1732 = vcvt.s32.f32 %v1700
        %v1733 = vcvt.s32.f32 %v1701
        %v1734 = vpack.c.bf16 %v1703, %v1702
        %v1735 = vpack.c.bf16 %v1705, %v1704
        %v1736 = vpack.c.bf16 %v1707, %v1706
        %v1737 = vpack.c.bf16 %v1709, %v1708
        %v1738 = vpack.c.bf16 %v1711, %v1710
        %v1739 = vpack.c.bf16 %v1713, %v1712
        %v1740 = vpack.c.bf16 %v1715, %v1714
        %v1741 = vpack.c.bf16 %v1717, %v1716
        %v1742 = vpack.c.bf16 %v1719, %v1718
        %v1743 = vpack.c.bf16 %v1721, %v1720
        %v1744 = vpack.c.bf16 %v1723, %v1722
        %v1745 = vpack.c.bf16 %v1725, %v1724
        %v1746 = vpack.c.bf16 %v1727, %v1726
        %v1747 = vpack.c.bf16 %v1729, %v1728
        %v1748 = vpack.c.bf16 %v1731, %v1730
        %v1749 = vpack.c.bf16 %v1733, %v1732
        %v1750 = vld [vmem:[%s1] sm:$0xf]
        %v1751 = vld [vmem:[%s1 + $0x4] sm:$0xf]
        %v1752 = vld [vmem:[%s1 + $0x8] sm:$0xf]
        %v1753 = vld [vmem:[%s1 + $0xc] sm:$0xf]
        %v1754 = vld [vmem:[%s1 + $0x10] sm:$0xf]
        %v1755 = vld [vmem:[%s1 + $0x14] sm:$0xf]
        %v1756 = vld [vmem:[%s1 + $0x18] sm:$0xf]
        %v1757 = vld [vmem:[%s1 + $0x1c] sm:$0xf]
        %v1758 = vld [vmem:[%s1 + $0x20] sm:$0xf]
        %v1759 = vld [vmem:[%s1 + $0x24] sm:$0xf]
        %v1760 = vld [vmem:[%s1 + $0x28] sm:$0xf]
        %v1761 = vld [vmem:[%s1 + $0x2c] sm:$0xf]
        %v1762 = vld [vmem:[%s1 + $0x30] sm:$0xf]
        %v1763 = vld [vmem:[%s1 + $0x34] sm:$0xf]
        %v1764 = vld [vmem:[%s1 + $0x38] sm:$0xf]
        %v1765 = vld [vmem:[%s1 + $0x3c] sm:$0xf]
        %v1766 = vld [vmem:[%s1 + $0x40] sm:$0xf]
        %v1767 = vld [vmem:[%s1 + $0x44] sm:$0xf]
        %v1768 = vld [vmem:[%s1 + $0x48] sm:$0xf]
        %v1769 = vld [vmem:[%s1 + $0x4c] sm:$0xf]
        %v1770 = vld [vmem:[%s1 + $0x50] sm:$0xf]
        %v1771 = vld [vmem:[%s1 + $0x54] sm:$0xf]
        %v1772 = vld [vmem:[%s1 + $0x58] sm:$0xf]
        %v1773 = vld [vmem:[%s1 + $0x5c] sm:$0xf]
        %v1774 = vld [vmem:[%s1 + $0x60] sm:$0xf]
        %v1775 = vld [vmem:[%s1 + $0x64] sm:$0xf]
        %v1776 = vld [vmem:[%s1 + $0x68] sm:$0xf]
        %v1777 = vld [vmem:[%s1 + $0x6c] sm:$0xf]
        %v1778 = vld [vmem:[%s1 + $0x70] sm:$0xf]
        %v1779 = vld [vmem:[%s1 + $0x74] sm:$0xf]
        %v1780 = vld [vmem:[%s1 + $0x78] sm:$0xf]
        %v1781 = vld [vmem:[%s1 + $0x7c] sm:$0xf]
        %v1798 = vunpack.c.l.b16 %v1766
        %v1799 = vunpack.c.l.b16 %v1767
        %v1800 = vunpack.c.l.b16 %v1768
        %v1801 = vunpack.c.l.b16 %v1769
        %v1802 = vunpack.c.l.b16 %v1770
        %v1803 = vunpack.c.l.b16 %v1771
        %v1804 = vunpack.c.l.b16 %v1772
        %v1805 = vunpack.c.l.b16 %v1773
        %v1806 = vunpack.c.l.b16 %v1774
        %v1807 = vunpack.c.l.b16 %v1775
        %v1808 = vunpack.c.l.b16 %v1776
        %v1809 = vunpack.c.l.b16 %v1777
        %v1810 = vunpack.c.l.b16 %v1778
        %v1811 = vunpack.c.l.b16 %v1779
        %v1812 = vunpack.c.l.b16 %v1780
        %v1813 = vunpack.c.l.b16 %v1781
        %v1814 = vpack.c.b16 %v1799, %v1798
        %v1815 = vpack.c.b16 %v1801, %v1800
        %v1816 = vpack.c.b16 %v1803, %v1802
        %v1817 = vpack.c.b16 %v1805, %v1804
        %v1818 = vpack.c.b16 %v1807, %v1806
        %v1819 = vpack.c.b16 %v1809, %v1808
        %v1820 = vpack.c.b16 %v1811, %v1810
        %v1821 = vpack.c.b16 %v1813, %v1812
        %1830 = vmatprep.subr.bf16.mxu0 0
        %1831 = vmatpush1.bf16.msra.mxu0 %v1821
        %1832 = vmatprep.subr.bf16.mxu0 0
        %1833 = vmatpush1.bf16.msra.mxu0 %v1820
        %1834 = vmatprep.subr.bf16.mxu0 0
        %1835 = vmatpush1.bf16.msra.mxu0 %v1819
        %1836 = vmatprep.subr.bf16.mxu0 0
        %1837 = vmatpush1.bf16.msra.mxu0 %v1818
        %1838 = vmatprep.subr.bf16.mxu0 0
        %1839 = vmatpush1.bf16.msra.mxu0 %v1817
        %1840 = vmatprep.subr.bf16.mxu0 0
        %1841 = vmatpush1.bf16.msra.mxu0 %v1816
        %1842 = vmatprep.subr.bf16.mxu0 0
        %1843 = vmatpush1.bf16.msra.mxu0 %v1815
        %1844 = vmatprep.subr.bf16.mxu0 0
        %1845 = vmatpush1.bf16.msra.mxu0 %v1814
        %1846 = vmatprep.subr.bf16.mxu0 0
        %1847 = vmatpush2.bf16.msra.mxu0 0
        %1848 = vmatprep.subr.bf16.mxu0 0
        %1849 = vmatpush2.bf16.msra.mxu0 0
        %1850 = vmatprep.subr.bf16.mxu0 0
        %1851 = vmatpush2.bf16.msra.mxu0 0
        %1852 = vmatprep.subr.bf16.mxu0 0
        %1853 = vmatpush2.bf16.msra.mxu0 0
        %1854 = vmatprep.subr.bf16.mxu0 0
        %1855 = vmatpush2.bf16.msra.mxu0 0
        %1856 = vmatprep.subr.bf16.mxu0 0
        %1857 = vmatpush2.bf16.msra.mxu0 0
        %1858 = vmatprep.subr.bf16.mxu0 0
        %1859 = vmatpush2.bf16.msra.mxu0 0
        %1860 = vmatprep.subr.bf16.mxu0 0
        %1861 = vmatpush2.bf16.msra.mxu0 0
        %1862 = vmatprep.mubr.bf16.mxu0 0
        %1863 = vmatmul.mubr.bf16.gmra.mxu0 %v1734
        %v1864 = vpop.f32.mrf.mxu0
        %v1865 = vadd.f32 0.0, %v1864
        %v1866 = vpop.f32.mrf.mxu0
        %v1867 = vpop.f32.mrf.mxu0
        %v1868 = vadd.f32 0.0, %v1867
        %v1869 = vpop.f32.mrf.mxu0
        %1870 = vmatprep.mubr.bf16.mxu0 0
        %1871 = vmatmul.mubr.bf16.gmra.mxu0 %v1735
        %v1872 = vpop.f32.mrf.mxu0
        %v1873 = vadd.f32 0.0, %v1872
        %v1874 = vpop.f32.mrf.mxu0
        %v1875 = vpop.f32.mrf.mxu0
        %v1876 = vadd.f32 0.0, %v1875
        %v1877 = vpop.f32.mrf.mxu0
        %1878 = vmatprep.mubr.bf16.mxu0 0
        %1879 = vmatmul.mubr.bf16.gmra.mxu0 %v1736
        %v1880 = vpop.f32.mrf.mxu0
        %v1881 = vadd.f32 0.0, %v1880
        %v1882 = vpop.f32.mrf.mxu0
        %v1883 = vpop.f32.mrf.mxu0
        %v1884 = vadd.f32 0.0, %v1883
        %v1885 = vpop.f32.mrf.mxu0
        %1886 = vmatprep.mubr.bf16.mxu0 0
        %1887 = vmatmul.mubr.bf16.gmra.mxu0 %v1737
        %v1888 = vpop.f32.mrf.mxu0
        %v1889 = vadd.f32 0.0, %v1888
        %v1890 = vpop.f32.mrf.mxu0
        %v1891 = vpop.f32.mrf.mxu0
        %v1892 = vadd.f32 0.0, %v1891
        %v1893 = vpop.f32.mrf.mxu0
        %1894 = vmatprep.mubr.bf16.mxu0 0
        %1895 = vmatmul.mubr.bf16.gmra.mxu0 %v1738
        %v1896 = vpop.f32.mrf.mxu0
        %v1897 = vadd.f32 0.0, %v1896
        %v1898 = vpop.f32.mrf.mxu0
        %v1899 = vpop.f32.mrf.mxu0
        %v1900 = vadd.f32 0.0, %v1899
        %v1901 = vpop.f32.mrf.mxu0
        %1902 = vmatprep.mubr.bf16.mxu0 0
        %1903 = vmatmul.mubr.bf16.gmra.mxu0 %v1739
        %v1904 = vpop.f32.mrf.mxu0
        %v1905 = vadd.f32 0.0, %v1904
        %v1906 = vpop.f32.mrf.mxu0
        %v1907 = vpop.f32.mrf.mxu0
        %v1908 = vadd.f32 0.0, %v1907
        %v1909 = vpop.f32.mrf.mxu0
        %1910 = vmatprep.mubr.bf16.mxu0 0
        %1911 = vmatmul.mubr.bf16.gmra.mxu0 %v1740
        %v1912 = vpop.f32.mrf.mxu0
        %v1913 = vadd.f32 0.0, %v1912
        %v1914 = vpop.f32.mrf.mxu0
        %v1915 = vpop.f32.mrf.mxu0
        %v1916 = vadd.f32 0.0, %v1915
        %v1917 = vpop.f32.mrf.mxu0
        %1918 = vmatprep.mubr.bf16.mxu0 0
        %1919 = vmatmul.mubr.bf16.gmra.mxu0 %v1741
        %v1920 = vpop.f32.mrf.mxu0
        %v1921 = vadd.f32 0.0, %v1920
        %v1922 = vpop.f32.mrf.mxu0
        %v1923 = vpop.f32.mrf.mxu0
        %v1924 = vadd.f32 0.0, %v1923
        %v1925 = vpop.f32.mrf.mxu0
        %1926 = vmatprep.mubr.bf16.mxu0 0
        %1927 = vmatmul.mubr.bf16.gmra.mxu0 %v1742
        %v1928 = vpop.f32.mrf.mxu0
        %v1929 = vadd.f32 0.0, %v1928
        %v1930 = vpop.f32.mrf.mxu0
        %v1931 = vpop.f32.mrf.mxu0
        %v1932 = vadd.f32 0.0, %v1931
        %v1933 = vpop.f32.mrf.mxu0
        %1934 = vmatprep.mubr.bf16.mxu0 0
        %1935 = vmatmul.mubr.bf16.gmra.mxu0 %v1743
        %v1936 = vpop.f32.mrf.mxu0
        %v1937 = vadd.f32 0.0, %v1936
        %v1938 = vpop.f32.mrf.mxu0
        %v1939 = vpop.f32.mrf.mxu0
        %v1940 = vadd.f32 0.0, %v1939
        %v1941 = vpop.f32.mrf.mxu0
        %1942 = vmatprep.mubr.bf16.mxu0 0
        %1943 = vmatmul.mubr.bf16.gmra.mxu0 %v1744
        %v1944 = vpop.f32.mrf.mxu0
        %v1945 = vadd.f32 0.0, %v1944
        %v1946 = vpop.f32.mrf.mxu0
        %v1947 = vpop.f32.mrf.mxu0
        %v1948 = vadd.f32 0.0, %v1947
        %v1949 = vpop.f32.mrf.mxu0
        %1950 = vmatprep.mubr.bf16.mxu0 0
        %1951 = vmatmul.mubr.bf16.gmra.mxu0 %v1745
        %v1952 = vpop.f32.mrf.mxu0
        %v1953 = vadd.f32 0.0, %v1952
        %v1954 = vpop.f32.mrf.mxu0
        %v1955 = vpop.f32.mrf.mxu0
        %v1956 = vadd.f32 0.0, %v1955
        %v1957 = vpop.f32.mrf.mxu0
        %1958 = vmatprep.mubr.bf16.mxu0 0
        %1959 = vmatmul.mubr.bf16.gmra.mxu0 %v1746
        %v1960 = vpop.f32.mrf.mxu0
        %v1961 = vadd.f32 0.0, %v1960
        %v1962 = vpop.f32.mrf.mxu0
        %v1963 = vpop.f32.mrf.mxu0
        %v1964 = vadd.f32 0.0, %v1963
        %v1965 = vpop.f32.mrf.mxu0
        %1966 = vmatprep.mubr.bf16.mxu0 0
        %1967 = vmatmul.mubr.bf16.gmra.mxu0 %v1747
        %v1968 = vpop.f32.mrf.mxu0
        %v1969 = vadd.f32 0.0, %v1968
        %v1970 = vpop.f32.mrf.mxu0
        %v1971 = vpop.f32.mrf.mxu0
        %v1972 = vadd.f32 0.0, %v1971
        %v1973 = vpop.f32.mrf.mxu0
        %1974 = vmatprep.mubr.bf16.mxu0 0
        %1975 = vmatmul.mubr.bf16.gmra.mxu0 %v1748
        %v1976 = vpop.f32.mrf.mxu0
        %v1977 = vadd.f32 0.0, %v1976
        %v1978 = vpop.f32.mrf.mxu0
        %v1979 = vpop.f32.mrf.mxu0
        %v1980 = vadd.f32 0.0, %v1979
        %v1981 = vpop.f32.mrf.mxu0
        %1982 = vmatprep.mubr.bf16.mxu0 0
        %1983 = vmatmul.mubr.bf16.gmra.mxu0 %v1749
        %v1984 = vpop.f32.mrf.mxu0
        %v1985 = vadd.f32 0.0, %v1984
        %v1986 = vpop.f32.mrf.mxu0
        %v1987 = vpop.f32.mrf.mxu0
        %v1988 = vadd.f32 0.0, %v1987
        %v1989 = vpop.f32.mrf.mxu0
        %1990 = vdwg.mxu0
        %v2007 = vunpack.c.l.b16 %v1750
        %v2008 = vunpack.c.l.b16 %v1751
        %v2009 = vunpack.c.l.b16 %v1752
        %v2010 = vunpack.c.l.b16 %v1753
        %v2011 = vunpack.c.l.b16 %v1754
        %v2012 = vunpack.c.l.b16 %v1755
        %v2013 = vunpack.c.l.b16 %v1756
        %v2014 = vunpack.c.l.b16 %v1757
        %v2015 = vunpack.c.l.b16 %v1758
        %v2016 = vunpack.c.l.b16 %v1759
        %v2017 = vunpack.c.l.b16 %v1760
        %v2018 = vunpack.c.l.b16 %v1761
        %v2019 = vunpack.c.l.b16 %v1762
        %v2020 = vunpack.c.l.b16 %v1763
        %v2021 = vunpack.c.l.b16 %v1764
        %v2022 = vunpack.c.l.b16 %v1765
        %v2023 = vpack.c.b16 %v2008, %v2007
        %v2024 = vpack.c.b16 %v2010, %v2009
        %v2025 = vpack.c.b16 %v2012, %v2011
        %v2026 = vpack.c.b16 %v2014, %v2013
        %v2027 = vpack.c.b16 %v2016, %v2015
        %v2028 = vpack.c.b16 %v2018, %v2017
        %v2029 = vpack.c.b16 %v2020, %v2019
        %v2030 = vpack.c.b16 %v2022, %v2021
        %2039 = vmatprep.subr.bf16.mxu0 0
        %2040 = vmatpush1.bf16.msra.mxu0 %v2030
        %2041 = vmatprep.subr.bf16.mxu0 0
        %2042 = vmatpush1.bf16.msra.mxu0 %v2029
        %2043 = vmatprep.subr.bf16.mxu0 0
        %2044 = vmatpush1.bf16.msra.mxu0 %v2028
        %2045 = vmatprep.subr.bf16.mxu0 0
        %2046 = vmatpush1.bf16.msra.mxu0 %v2027
        %2047 = vmatprep.subr.bf16.mxu0 0
        %2048 = vmatpush1.bf16.msra.mxu0 %v2026
        %2049 = vmatprep.subr.bf16.mxu0 0
        %2050 = vmatpush1.bf16.msra.mxu0 %v2025
        %2051 = vmatprep.subr.bf16.mxu0 0
        %2052 = vmatpush1.bf16.msra.mxu0 %v2024
        %2053 = vmatprep.subr.bf16.mxu0 0
        %2054 = vmatpush1.bf16.msra.mxu0 %v2023
        %2055 = vmatprep.subr.bf16.mxu0 0
        %2056 = vmatpush2.bf16.msra.mxu0 0
        %2057 = vmatprep.subr.bf16.mxu0 0
        %2058 = vmatpush2.bf16.msra.mxu0 0
        %2059 = vmatprep.subr.bf16.mxu0 0
        %2060 = vmatpush2.bf16.msra.mxu0 0
        %2061 = vmatprep.subr.bf16.mxu0 0
        %2062 = vmatpush2.bf16.msra.mxu0 0
        %2063 = vmatprep.subr.bf16.mxu0 0
        %2064 = vmatpush2.bf16.msra.mxu0 0
        %2065 = vmatprep.subr.bf16.mxu0 0
        %2066 = vmatpush2.bf16.msra.mxu0 0
        %2067 = vmatprep.subr.bf16.mxu0 0
        %2068 = vmatpush2.bf16.msra.mxu0 0
        %2069 = vmatprep.subr.bf16.mxu0 0
        %2070 = vmatpush2.bf16.msra.mxu0 0
        %2071 = vmatprep.mubr.bf16.mxu0 0
        %2072 = vmatmul.mubr.bf16.gmra.mxu0 %v560
        %v2073 = vpop.f32.mrf.mxu0
        %v2074 = vadd.f32 %v1865, %v2073
        %v2075 = vpop.f32.mrf.mxu0
        %v2076 = vpop.f32.mrf.mxu0
        %v2077 = vadd.f32 %v1868, %v2076
        %v2078 = vpop.f32.mrf.mxu0
        %2079 = vmatprep.mubr.bf16.mxu0 0
        %2080 = vmatmul.mubr.bf16.gmra.mxu0 %v561
        %v2081 = vpop.f32.mrf.mxu0
        %v2082 = vadd.f32 %v1873, %v2081
        %v2083 = vpop.f32.mrf.mxu0
        %v2084 = vpop.f32.mrf.mxu0
        %v2085 = vadd.f32 %v1876, %v2084
        %v2086 = vpop.f32.mrf.mxu0
        %2087 = vmatprep.mubr.bf16.mxu0 0
        %2088 = vmatmul.mubr.bf16.gmra.mxu0 %v562
        %v2089 = vpop.f32.mrf.mxu0
        %v2090 = vadd.f32 %v1881, %v2089
        %v2091 = vpop.f32.mrf.mxu0
        %v2092 = vpop.f32.mrf.mxu0
        %v2093 = vadd.f32 %v1884, %v2092
        %v2094 = vpop.f32.mrf.mxu0
        %2095 = vmatprep.mubr.bf16.mxu0 0
        %2096 = vmatmul.mubr.bf16.gmra.mxu0 %v563
        %v2097 = vpop.f32.mrf.mxu0
        %v2098 = vadd.f32 %v1889, %v2097
        %v2099 = vpop.f32.mrf.mxu0
        %v2100 = vpop.f32.mrf.mxu0
        %v2101 = vadd.f32 %v1892, %v2100
        %v2102 = vpop.f32.mrf.mxu0
        %2103 = vmatprep.mubr.bf16.mxu0 0
        %2104 = vmatmul.mubr.bf16.gmra.mxu0 %v564
        %v2105 = vpop.f32.mrf.mxu0
        %v2106 = vadd.f32 %v1897, %v2105
        %v2107 = vpop.f32.mrf.mxu0
        %v2108 = vpop.f32.mrf.mxu0
        %v2109 = vadd.f32 %v1900, %v2108
        %v2110 = vpop.f32.mrf.mxu0
        %2111 = vmatprep.mubr.bf16.mxu0 0
        %2112 = vmatmul.mubr.bf16.gmra.mxu0 %v565
        %v2113 = vpop.f32.mrf.mxu0
        %v2114 = vadd.f32 %v1905, %v2113
        %v2115 = vpop.f32.mrf.mxu0
        %v2116 = vpop.f32.mrf.mxu0
        %v2117 = vadd.f32 %v1908, %v2116
        %v2118 = vpop.f32.mrf.mxu0
        %2119 = vmatprep.mubr.bf16.mxu0 0
        %2120 = vmatmul.mubr.bf16.gmra.mxu0 %v566
        %v2121 = vpop.f32.mrf.mxu0
        %v2122 = vadd.f32 %v1913, %v2121
        %v2123 = vpop.f32.mrf.mxu0
        %v2124 = vpop.f32.mrf.mxu0
        %v2125 = vadd.f32 %v1916, %v2124
        %v2126 = vpop.f32.mrf.mxu0
        %2127 = vmatprep.mubr.bf16.mxu0 0
        %2128 = vmatmul.mubr.bf16.gmra.mxu0 %v567
        %v2129 = vpop.f32.mrf.mxu0
        %v2130 = vadd.f32 %v1921, %v2129
        %v2131 = vpop.f32.mrf.mxu0
        %v2132 = vpop.f32.mrf.mxu0
        %v2133 = vadd.f32 %v1924, %v2132
        %v2134 = vpop.f32.mrf.mxu0
        %2135 = vmatprep.mubr.bf16.mxu0 0
        %2136 = vmatmul.mubr.bf16.gmra.mxu0 %v568
        %v2137 = vpop.f32.mrf.mxu0
        %v2138 = vadd.f32 %v1929, %v2137
        %v2139 = vpop.f32.mrf.mxu0
        %v2140 = vpop.f32.mrf.mxu0
        %v2141 = vadd.f32 %v1932, %v2140
        %v2142 = vpop.f32.mrf.mxu0
        %2143 = vmatprep.mubr.bf16.mxu0 0
        %2144 = vmatmul.mubr.bf16.gmra.mxu0 %v569
        %v2145 = vpop.f32.mrf.mxu0
        %v2146 = vadd.f32 %v1937, %v2145
        %v2147 = vpop.f32.mrf.mxu0
        %v2148 = vpop.f32.mrf.mxu0
        %v2149 = vadd.f32 %v1940, %v2148
        %v2150 = vpop.f32.mrf.mxu0
        %2151 = vmatprep.mubr.bf16.mxu0 0
        %2152 = vmatmul.mubr.bf16.gmra.mxu0 %v570
        %v2153 = vpop.f32.mrf.mxu0
        %v2154 = vadd.f32 %v1945, %v2153
        %v2155 = vpop.f32.mrf.mxu0
        %v2156 = vpop.f32.mrf.mxu0
        %v2157 = vadd.f32 %v1948, %v2156
        %v2158 = vpop.f32.mrf.mxu0
        %2159 = vmatprep.mubr.bf16.mxu0 0
        %2160 = vmatmul.mubr.bf16.gmra.mxu0 %v571
        %v2161 = vpop.f32.mrf.mxu0
        %v2162 = vadd.f32 %v1953, %v2161
        %v2163 = vpop.f32.mrf.mxu0
        %v2164 = vpop.f32.mrf.mxu0
        %v2165 = vadd.f32 %v1956, %v2164
        %v2166 = vpop.f32.mrf.mxu0
        %2167 = vmatprep.mubr.bf16.mxu0 0
        %2168 = vmatmul.mubr.bf16.gmra.mxu0 %v572
        %v2169 = vpop.f32.mrf.mxu0
        %v2170 = vadd.f32 %v1961, %v2169
        %v2171 = vpop.f32.mrf.mxu0
        %v2172 = vpop.f32.mrf.mxu0
        %v2173 = vadd.f32 %v1964, %v2172
        %v2174 = vpop.f32.mrf.mxu0
        %2175 = vmatprep.mubr.bf16.mxu0 0
        %2176 = vmatmul.mubr.bf16.gmra.mxu0 %v573
        %v2177 = vpop.f32.mrf.mxu0
        %v2178 = vadd.f32 %v1969, %v2177
        %v2179 = vpop.f32.mrf.mxu0
        %v2180 = vpop.f32.mrf.mxu0
        %v2181 = vadd.f32 %v1972, %v2180
        %v2182 = vpop.f32.mrf.mxu0
        %2183 = vmatprep.mubr.bf16.mxu0 0
        %2184 = vmatmul.mubr.bf16.gmra.mxu0 %v574
        %v2185 = vpop.f32.mrf.mxu0
        %v2186 = vadd.f32 %v1977, %v2185
        %v2187 = vpop.f32.mrf.mxu0
        %v2188 = vpop.f32.mrf.mxu0
        %v2189 = vadd.f32 %v1980, %v2188
        %v2190 = vpop.f32.mrf.mxu0
        %2191 = vmatprep.mubr.bf16.mxu0 0
        %2192 = vmatmul.mubr.bf16.gmra.mxu0 %v575
        %v2193 = vpop.f32.mrf.mxu0
        %v2194 = vadd.f32 %v1985, %v2193
        %v2195 = vpop.f32.mrf.mxu0
        %v2196 = vpop.f32.mrf.mxu0
        %v2197 = vadd.f32 %v1988, %v2196
        %v2198 = vpop.f32.mrf.mxu0
        %2199 = vdwg.mxu0
        %v2200 = vld [vmem:[%s2] sm:$0xf]
        %v2201 = vld [vmem:[%s2 + $0x4] sm:$0xf]
        %v2202 = vld [vmem:[%s2 + $0x8] sm:$0xf]
        %v2203 = vld [vmem:[%s2 + $0xc] sm:$0xf]
        %v2204 = vld [vmem:[%s2 + $0x10] sm:$0xf]
        %v2205 = vld [vmem:[%s2 + $0x14] sm:$0xf]
        %v2206 = vld [vmem:[%s2 + $0x18] sm:$0xf]
        %v2207 = vld [vmem:[%s2 + $0x1c] sm:$0xf]
        %v2208 = vld [vmem:[%s2 + $0x20] sm:$0xf]
        %v2209 = vld [vmem:[%s2 + $0x24] sm:$0xf]
        %v2210 = vld [vmem:[%s2 + $0x28] sm:$0xf]
        %v2211 = vld [vmem:[%s2 + $0x2c] sm:$0xf]
        %v2212 = vld [vmem:[%s2 + $0x30] sm:$0xf]
        %v2213 = vld [vmem:[%s2 + $0x34] sm:$0xf]
        %v2214 = vld [vmem:[%s2 + $0x38] sm:$0xf]
        %v2215 = vld [vmem:[%s2 + $0x3c] sm:$0xf]
        %v2232 = vunpack.c.l.b16 %v2200
        %v2233 = vunpack.c.l.b16 %v2201
        %v2234 = vunpack.c.l.b16 %v2202
        %v2235 = vunpack.c.l.b16 %v2203
        %v2236 = vunpack.c.l.b16 %v2204
        %v2237 = vunpack.c.l.b16 %v2205
        %v2238 = vunpack.c.l.b16 %v2206
        %v2239 = vunpack.c.l.b16 %v2207
        %v2240 = vunpack.c.l.b16 %v2208
        %v2241 = vunpack.c.l.b16 %v2209
        %v2242 = vunpack.c.l.b16 %v2210
        %v2243 = vunpack.c.l.b16 %v2211
        %v2244 = vunpack.c.l.b16 %v2212
        %v2245 = vunpack.c.l.b16 %v2213
        %v2246 = vunpack.c.l.b16 %v2214
        %v2247 = vunpack.c.l.b16 %v2215
        %v2248 = vpack.c.b16 %v2233, %v2232
        %v2249 = vpack.c.b16 %v2235, %v2234
        %v2250 = vpack.c.b16 %v2237, %v2236
        %v2251 = vpack.c.b16 %v2239, %v2238
        %v2252 = vpack.c.b16 %v2241, %v2240
        %v2253 = vpack.c.b16 %v2243, %v2242
        %v2254 = vpack.c.b16 %v2245, %v2244
        %v2255 = vpack.c.b16 %v2247, %v2246
        %2264 = vmatprep.subr.bf16.mxu0 0
        %2265 = vmatpush1.bf16.msra.mxu0 %v2255
        %2266 = vmatprep.subr.bf16.mxu0 0
        %2267 = vmatpush1.bf16.msra.mxu0 %v2254
        %2268 = vmatprep.subr.bf16.mxu0 0
        %2269 = vmatpush1.bf16.msra.mxu0 %v2253
        %2270 = vmatprep.subr.bf16.mxu0 0
        %2271 = vmatpush1.bf16.msra.mxu0 %v2252
        %2272 = vmatprep.subr.bf16.mxu0 0
        %2273 = vmatpush1.bf16.msra.mxu0 %v2251
        %2274 = vmatprep.subr.bf16.mxu0 0
        %2275 = vmatpush1.bf16.msra.mxu0 %v2250
        %2276 = vmatprep.subr.bf16.mxu0 0
        %2277 = vmatpush1.bf16.msra.mxu0 %v2249
        %2278 = vmatprep.subr.bf16.mxu0 0
        %2279 = vmatpush1.bf16.msra.mxu0 %v2248
        %2280 = vmatprep.subr.bf16.mxu0 0
        %2281 = vmatpush2.bf16.msra.mxu0 0
        %2282 = vmatprep.subr.bf16.mxu0 0
        %2283 = vmatpush2.bf16.msra.mxu0 0
        %2284 = vmatprep.subr.bf16.mxu0 0
        %2285 = vmatpush2.bf16.msra.mxu0 0
        %2286 = vmatprep.subr.bf16.mxu0 0
        %2287 = vmatpush2.bf16.msra.mxu0 0
        %2288 = vmatprep.subr.bf16.mxu0 0
        %2289 = vmatpush2.bf16.msra.mxu0 0
        %2290 = vmatprep.subr.bf16.mxu0 0
        %2291 = vmatpush2.bf16.msra.mxu0 0
        %2292 = vmatprep.subr.bf16.mxu0 0
        %2293 = vmatpush2.bf16.msra.mxu0 0
        %2294 = vmatprep.subr.bf16.mxu0 0
        %2295 = vmatpush2.bf16.msra.mxu0 0
        %2296 = vmatprep.mubr.bf16.mxu0 0
        %2297 = vmatmul.mubr.bf16.gmra.mxu0 %v560
        %v2298 = vpop.f32.mrf.mxu0
        %v2299 = vadd.f32 0.0, %v2298
        %v2300 = vpop.f32.mrf.mxu0
        %v2301 = vpop.f32.mrf.mxu0
        %v2302 = vadd.f32 0.0, %v2301
        %v2303 = vpop.f32.mrf.mxu0
        %2304 = vmatprep.mubr.bf16.mxu0 0
        %2305 = vmatmul.mubr.bf16.gmra.mxu0 %v561
        %v2306 = vpop.f32.mrf.mxu0
        %v2307 = vadd.f32 0.0, %v2306
        %v2308 = vpop.f32.mrf.mxu0
        %v2309 = vpop.f32.mrf.mxu0
        %v2310 = vadd.f32 0.0, %v2309
        %v2311 = vpop.f32.mrf.mxu0
        %2312 = vmatprep.mubr.bf16.mxu0 0
        %2313 = vmatmul.mubr.bf16.gmra.mxu0 %v562
        %v2314 = vpop.f32.mrf.mxu0
        %v2315 = vadd.f32 0.0, %v2314
        %v2316 = vpop.f32.mrf.mxu0
        %v2317 = vpop.f32.mrf.mxu0
        %v2318 = vadd.f32 0.0, %v2317
        %v2319 = vpop.f32.mrf.mxu0
        %2320 = vmatprep.mubr.bf16.mxu0 0
        %2321 = vmatmul.mubr.bf16.gmra.mxu0 %v563
        %v2322 = vpop.f32.mrf.mxu0
        %v2323 = vadd.f32 0.0, %v2322
        %v2324 = vpop.f32.mrf.mxu0
        %v2325 = vpop.f32.mrf.mxu0
        %v2326 = vadd.f32 0.0, %v2325
        %v2327 = vpop.f32.mrf.mxu0
        %2328 = vmatprep.mubr.bf16.mxu0 0
        %2329 = vmatmul.mubr.bf16.gmra.mxu0 %v564
        %v2330 = vpop.f32.mrf.mxu0
        %v2331 = vadd.f32 0.0, %v2330
        %v2332 = vpop.f32.mrf.mxu0
        %v2333 = vpop.f32.mrf.mxu0
        %v2334 = vadd.f32 0.0, %v2333
        %v2335 = vpop.f32.mrf.mxu0
        %2336 = vmatprep.mubr.bf16.mxu0 0
        %2337 = vmatmul.mubr.bf16.gmra.mxu0 %v565
        %v2338 = vpop.f32.mrf.mxu0
        %v2339 = vadd.f32 0.0, %v2338
        %v2340 = vpop.f32.mrf.mxu0
        %v2341 = vpop.f32.mrf.mxu0
        %v2342 = vadd.f32 0.0, %v2341
        %v2343 = vpop.f32.mrf.mxu0
        %2344 = vmatprep.mubr.bf16.mxu0 0
        %2345 = vmatmul.mubr.bf16.gmra.mxu0 %v566
        %v2346 = vpop.f32.mrf.mxu0
        %v2347 = vadd.f32 0.0, %v2346
        %v2348 = vpop.f32.mrf.mxu0
        %v2349 = vpop.f32.mrf.mxu0
        %v2350 = vadd.f32 0.0, %v2349
        %v2351 = vpop.f32.mrf.mxu0
        %2352 = vmatprep.mubr.bf16.mxu0 0
        %2353 = vmatmul.mubr.bf16.gmra.mxu0 %v567
        %v2354 = vpop.f32.mrf.mxu0
        %v2355 = vadd.f32 0.0, %v2354
        %v2356 = vpop.f32.mrf.mxu0
        %v2357 = vpop.f32.mrf.mxu0
        %v2358 = vadd.f32 0.0, %v2357
        %v2359 = vpop.f32.mrf.mxu0
        %2360 = vmatprep.mubr.bf16.mxu0 0
        %2361 = vmatmul.mubr.bf16.gmra.mxu0 %v568
        %v2362 = vpop.f32.mrf.mxu0
        %v2363 = vadd.f32 0.0, %v2362
        %v2364 = vpop.f32.mrf.mxu0
        %v2365 = vpop.f32.mrf.mxu0
        %v2366 = vadd.f32 0.0, %v2365
        %v2367 = vpop.f32.mrf.mxu0
        %2368 = vmatprep.mubr.bf16.mxu0 0
        %2369 = vmatmul.mubr.bf16.gmra.mxu0 %v569
        %v2370 = vpop.f32.mrf.mxu0
        %v2371 = vadd.f32 0.0, %v2370
        %v2372 = vpop.f32.mrf.mxu0
        %v2373 = vpop.f32.mrf.mxu0
        %v2374 = vadd.f32 0.0, %v2373
        %v2375 = vpop.f32.mrf.mxu0
        %2376 = vmatprep.mubr.bf16.mxu0 0
        %2377 = vmatmul.mubr.bf16.gmra.mxu0 %v570
        %v2378 = vpop.f32.mrf.mxu0
        %v2379 = vadd.f32 0.0, %v2378
        %v2380 = vpop.f32.mrf.mxu0
        %v2381 = vpop.f32.mrf.mxu0
        %v2382 = vadd.f32 0.0, %v2381
        %v2383 = vpop.f32.mrf.mxu0
        %2384 = vmatprep.mubr.bf16.mxu0 0
        %2385 = vmatmul.mubr.bf16.gmra.mxu0 %v571
        %v2386 = vpop.f32.mrf.mxu0
        %v2387 = vadd.f32 0.0, %v2386
        %v2388 = vpop.f32.mrf.mxu0
        %v2389 = vpop.f32.mrf.mxu0
        %v2390 = vadd.f32 0.0, %v2389
        %v2391 = vpop.f32.mrf.mxu0
        %2392 = vmatprep.mubr.bf16.mxu0 0
        %2393 = vmatmul.mubr.bf16.gmra.mxu0 %v572
        %v2394 = vpop.f32.mrf.mxu0
        %v2395 = vadd.f32 0.0, %v2394
        %v2396 = vpop.f32.mrf.mxu0
        %v2397 = vpop.f32.mrf.mxu0
        %v2398 = vadd.f32 0.0, %v2397
        %v2399 = vpop.f32.mrf.mxu0
        %2400 = vmatprep.mubr.bf16.mxu0 0
        %2401 = vmatmul.mubr.bf16.gmra.mxu0 %v573
        %v2402 = vpop.f32.mrf.mxu0
        %v2403 = vadd.f32 0.0, %v2402
        %v2404 = vpop.f32.mrf.mxu0
        %v2405 = vpop.f32.mrf.mxu0
        %v2406 = vadd.f32 0.0, %v2405
        %v2407 = vpop.f32.mrf.mxu0
        %2408 = vmatprep.mubr.bf16.mxu0 0
        %2409 = vmatmul.mubr.bf16.gmra.mxu0 %v574
        %v2410 = vpop.f32.mrf.mxu0
        %v2411 = vadd.f32 0.0, %v2410
        %v2412 = vpop.f32.mrf.mxu0
        %v2413 = vpop.f32.mrf.mxu0
        %v2414 = vadd.f32 0.0, %v2413
        %v2415 = vpop.f32.mrf.mxu0
        %2416 = vmatprep.mubr.bf16.mxu0 0
        %2417 = vmatmul.mubr.bf16.gmra.mxu0 %v575
        %v2418 = vpop.f32.mrf.mxu0
        %v2419 = vadd.f32 0.0, %v2418
        %v2420 = vpop.f32.mrf.mxu0
        %v2421 = vpop.f32.mrf.mxu0
        %v2422 = vadd.f32 0.0, %v2421
        %v2423 = vpop.f32.mrf.mxu0
        %2424 = vdwg.mxu0
        %v2425 = vadd.f32 %v2074, %v2299
        %v2426 = vadd.f32 %v2077, %v2302
        %v2427 = vadd.f32 %v2082, %v2307
        %v2428 = vadd.f32 %v2085, %v2310
        %v2429 = vadd.f32 %v2090, %v2315
        %v2430 = vadd.f32 %v2093, %v2318
        %v2431 = vadd.f32 %v2098, %v2323
        %v2432 = vadd.f32 %v2101, %v2326
        %v2433 = vadd.f32 %v2106, %v2331
        %v2434 = vadd.f32 %v2109, %v2334
        %v2435 = vadd.f32 %v2114, %v2339
        %v2436 = vadd.f32 %v2117, %v2342
        %v2437 = vadd.f32 %v2122, %v2347
        %v2438 = vadd.f32 %v2125, %v2350
        %v2439 = vadd.f32 %v2130, %v2355
        %v2440 = vadd.f32 %v2133, %v2358
        %v2441 = vadd.f32 %v2138, %v2363
        %v2442 = vadd.f32 %v2141, %v2366
        %v2443 = vadd.f32 %v2146, %v2371
        %v2444 = vadd.f32 %v2149, %v2374
        %v2445 = vadd.f32 %v2154, %v2379
        %v2446 = vadd.f32 %v2157, %v2382
        %v2447 = vadd.f32 %v2162, %v2387
        %v2448 = vadd.f32 %v2165, %v2390
        %v2449 = vadd.f32 %v2170, %v2395
        %v2450 = vadd.f32 %v2173, %v2398
        %v2451 = vadd.f32 %v2178, %v2403
        %v2452 = vadd.f32 %v2181, %v2406
        %v2453 = vadd.f32 %v2186, %v2411
        %v2454 = vadd.f32 %v2189, %v2414
        %v2455 = vadd.f32 %v2194, %v2419
        %v2456 = vadd.f32 %v2197, %v2422
        %v2457 = vld [vmem:[%s2 + $0x40] sm:$0xf]
        %v2458 = vld [vmem:[%s2 + $0x44] sm:$0xf]
        %v2459 = vld [vmem:[%s2 + $0x48] sm:$0xf]
        %v2460 = vld [vmem:[%s2 + $0x4c] sm:$0xf]
        %v2461 = vld [vmem:[%s2 + $0x50] sm:$0xf]
        %v2462 = vld [vmem:[%s2 + $0x54] sm:$0xf]
        %v2463 = vld [vmem:[%s2 + $0x58] sm:$0xf]
        %v2464 = vld [vmem:[%s2 + $0x5c] sm:$0xf]
        %v2465 = vld [vmem:[%s2 + $0x60] sm:$0xf]
        %v2466 = vld [vmem:[%s2 + $0x64] sm:$0xf]
        %v2467 = vld [vmem:[%s2 + $0x68] sm:$0xf]
        %v2468 = vld [vmem:[%s2 + $0x6c] sm:$0xf]
        %v2469 = vld [vmem:[%s2 + $0x70] sm:$0xf]
        %v2470 = vld [vmem:[%s2 + $0x74] sm:$0xf]
        %v2471 = vld [vmem:[%s2 + $0x78] sm:$0xf]
        %v2472 = vld [vmem:[%s2 + $0x7c] sm:$0xf]
        %v2489 = vunpack.c.l.b16 %v2457
        %v2490 = vunpack.c.l.b16 %v2458
        %v2491 = vunpack.c.l.b16 %v2459
        %v2492 = vunpack.c.l.b16 %v2460
        %v2493 = vunpack.c.l.b16 %v2461
        %v2494 = vunpack.c.l.b16 %v2462
        %v2495 = vunpack.c.l.b16 %v2463
        %v2496 = vunpack.c.l.b16 %v2464
        %v2497 = vunpack.c.l.b16 %v2465
        %v2498 = vunpack.c.l.b16 %v2466
        %v2499 = vunpack.c.l.b16 %v2467
        %v2500 = vunpack.c.l.b16 %v2468
        %v2501 = vunpack.c.l.b16 %v2469
        %v2502 = vunpack.c.l.b16 %v2470
        %v2503 = vunpack.c.l.b16 %v2471
        %v2504 = vunpack.c.l.b16 %v2472
        %v2505 = vpack.c.b16 %v2490, %v2489
        %v2506 = vpack.c.b16 %v2492, %v2491
        %v2507 = vpack.c.b16 %v2494, %v2493
        %v2508 = vpack.c.b16 %v2496, %v2495
        %v2509 = vpack.c.b16 %v2498, %v2497
        %v2510 = vpack.c.b16 %v2500, %v2499
        %v2511 = vpack.c.b16 %v2502, %v2501
        %v2512 = vpack.c.b16 %v2504, %v2503
        %2521 = vmatprep.subr.bf16.mxu0 0
        %2522 = vmatpush1.bf16.msra.mxu0 %v2512
        %2523 = vmatprep.subr.bf16.mxu0 0
        %2524 = vmatpush1.bf16.msra.mxu0 %v2511
        %2525 = vmatprep.subr.bf16.mxu0 0
        %2526 = vmatpush1.bf16.msra.mxu0 %v2510
        %2527 = vmatprep.subr.bf16.mxu0 0
        %2528 = vmatpush1.bf16.msra.mxu0 %v2509
        %2529 = vmatprep.subr.bf16.mxu0 0
        %2530 = vmatpush1.bf16.msra.mxu0 %v2508
        %2531 = vmatprep.subr.bf16.mxu0 0
        %2532 = vmatpush1.bf16.msra.mxu0 %v2507
        %2533 = vmatprep.subr.bf16.mxu0 0
        %2534 = vmatpush1.bf16.msra.mxu0 %v2506
        %2535 = vmatprep.subr.bf16.mxu0 0
        %2536 = vmatpush1.bf16.msra.mxu0 %v2505
        %2537 = vmatprep.subr.bf16.mxu0 0
        %2538 = vmatpush2.bf16.msra.mxu0 0
        %2539 = vmatprep.subr.bf16.mxu0 0
        %2540 = vmatpush2.bf16.msra.mxu0 0
        %2541 = vmatprep.subr.bf16.mxu0 0
        %2542 = vmatpush2.bf16.msra.mxu0 0
        %2543 = vmatprep.subr.bf16.mxu0 0
        %2544 = vmatpush2.bf16.msra.mxu0 0
        %2545 = vmatprep.subr.bf16.mxu0 0
        %2546 = vmatpush2.bf16.msra.mxu0 0
        %2547 = vmatprep.subr.bf16.mxu0 0
        %2548 = vmatpush2.bf16.msra.mxu0 0
        %2549 = vmatprep.subr.bf16.mxu0 0
        %2550 = vmatpush2.bf16.msra.mxu0 0
        %2551 = vmatprep.subr.bf16.mxu0 0
        %2552 = vmatpush2.bf16.msra.mxu0 0
        %2553 = vmatprep.mubr.bf16.mxu0 0
        %2554 = vmatmul.mubr.bf16.gmra.mxu0 %v1734
        %v2555 = vpop.f32.mrf.mxu0
        %v2556 = vadd.f32 0.0, %v2555
        %v2557 = vpop.f32.mrf.mxu0
        %v2558 = vpop.f32.mrf.mxu0
        %v2559 = vadd.f32 0.0, %v2558
        %v2560 = vpop.f32.mrf.mxu0
        %2561 = vmatprep.mubr.bf16.mxu0 0
        %2562 = vmatmul.mubr.bf16.gmra.mxu0 %v1735
        %v2563 = vpop.f32.mrf.mxu0
        %v2564 = vadd.f32 0.0, %v2563
        %v2565 = vpop.f32.mrf.mxu0
        %v2566 = vpop.f32.mrf.mxu0
        %v2567 = vadd.f32 0.0, %v2566
        %v2568 = vpop.f32.mrf.mxu0
        %2569 = vmatprep.mubr.bf16.mxu0 0
        %2570 = vmatmul.mubr.bf16.gmra.mxu0 %v1736
        %v2571 = vpop.f32.mrf.mxu0
        %v2572 = vadd.f32 0.0, %v2571
        %v2573 = vpop.f32.mrf.mxu0
        %v2574 = vpop.f32.mrf.mxu0
        %v2575 = vadd.f32 0.0, %v2574
        %v2576 = vpop.f32.mrf.mxu0
        %2577 = vmatprep.mubr.bf16.mxu0 0
        %2578 = vmatmul.mubr.bf16.gmra.mxu0 %v1737
        %v2579 = vpop.f32.mrf.mxu0
        %v2580 = vadd.f32 0.0, %v2579
        %v2581 = vpop.f32.mrf.mxu0
        %v2582 = vpop.f32.mrf.mxu0
        %v2583 = vadd.f32 0.0, %v2582
        %v2584 = vpop.f32.mrf.mxu0
        %2585 = vmatprep.mubr.bf16.mxu0 0
        %2586 = vmatmul.mubr.bf16.gmra.mxu0 %v1738
        %v2587 = vpop.f32.mrf.mxu0
        %v2588 = vadd.f32 0.0, %v2587
        %v2589 = vpop.f32.mrf.mxu0
        %v2590 = vpop.f32.mrf.mxu0
        %v2591 = vadd.f32 0.0, %v2590
        %v2592 = vpop.f32.mrf.mxu0
        %2593 = vmatprep.mubr.bf16.mxu0 0
        %2594 = vmatmul.mubr.bf16.gmra.mxu0 %v1739
        %v2595 = vpop.f32.mrf.mxu0
        %v2596 = vadd.f32 0.0, %v2595
        %v2597 = vpop.f32.mrf.mxu0
        %v2598 = vpop.f32.mrf.mxu0
        %v2599 = vadd.f32 0.0, %v2598
        %v2600 = vpop.f32.mrf.mxu0
        %2601 = vmatprep.mubr.bf16.mxu0 0
        %2602 = vmatmul.mubr.bf16.gmra.mxu0 %v1740
        %v2603 = vpop.f32.mrf.mxu0
        %v2604 = vadd.f32 0.0, %v2603
        %v2605 = vpop.f32.mrf.mxu0
        %v2606 = vpop.f32.mrf.mxu0
        %v2607 = vadd.f32 0.0, %v2606
        %v2608 = vpop.f32.mrf.mxu0
        %2609 = vmatprep.mubr.bf16.mxu0 0
        %2610 = vmatmul.mubr.bf16.gmra.mxu0 %v1741
        %v2611 = vpop.f32.mrf.mxu0
        %v2612 = vadd.f32 0.0, %v2611
        %v2613 = vpop.f32.mrf.mxu0
        %v2614 = vpop.f32.mrf.mxu0
        %v2615 = vadd.f32 0.0, %v2614
        %v2616 = vpop.f32.mrf.mxu0
        %2617 = vmatprep.mubr.bf16.mxu0 0
        %2618 = vmatmul.mubr.bf16.gmra.mxu0 %v1742
        %v2619 = vpop.f32.mrf.mxu0
        %v2620 = vadd.f32 0.0, %v2619
        %v2621 = vpop.f32.mrf.mxu0
        %v2622 = vpop.f32.mrf.mxu0
        %v2623 = vadd.f32 0.0, %v2622
        %v2624 = vpop.f32.mrf.mxu0
        %2625 = vmatprep.mubr.bf16.mxu0 0
        %2626 = vmatmul.mubr.bf16.gmra.mxu0 %v1743
        %v2627 = vpop.f32.mrf.mxu0
        %v2628 = vadd.f32 0.0, %v2627
        %v2629 = vpop.f32.mrf.mxu0
        %v2630 = vpop.f32.mrf.mxu0
        %v2631 = vadd.f32 0.0, %v2630
        %v2632 = vpop.f32.mrf.mxu0
        %2633 = vmatprep.mubr.bf16.mxu0 0
        %2634 = vmatmul.mubr.bf16.gmra.mxu0 %v1744
        %v2635 = vpop.f32.mrf.mxu0
        %v2636 = vadd.f32 0.0, %v2635
        %v2637 = vpop.f32.mrf.mxu0
        %v2638 = vpop.f32.mrf.mxu0
        %v2639 = vadd.f32 0.0, %v2638
        %v2640 = vpop.f32.mrf.mxu0
        %2641 = vmatprep.mubr.bf16.mxu0 0
        %2642 = vmatmul.mubr.bf16.gmra.mxu0 %v1745
        %v2643 = vpop.f32.mrf.mxu0
        %v2644 = vadd.f32 0.0, %v2643
        %v2645 = vpop.f32.mrf.mxu0
        %v2646 = vpop.f32.mrf.mxu0
        %v2647 = vadd.f32 0.0, %v2646
        %v2648 = vpop.f32.mrf.mxu0
        %2649 = vmatprep.mubr.bf16.mxu0 0
        %2650 = vmatmul.mubr.bf16.gmra.mxu0 %v1746
        %v2651 = vpop.f32.mrf.mxu0
        %v2652 = vadd.f32 0.0, %v2651
        %v2653 = vpop.f32.mrf.mxu0
        %v2654 = vpop.f32.mrf.mxu0
        %v2655 = vadd.f32 0.0, %v2654
        %v2656 = vpop.f32.mrf.mxu0
        %2657 = vmatprep.mubr.bf16.mxu0 0
        %2658 = vmatmul.mubr.bf16.gmra.mxu0 %v1747
        %v2659 = vpop.f32.mrf.mxu0
        %v2660 = vadd.f32 0.0, %v2659
        %v2661 = vpop.f32.mrf.mxu0
        %v2662 = vpop.f32.mrf.mxu0
        %v2663 = vadd.f32 0.0, %v2662
        %v2664 = vpop.f32.mrf.mxu0
        %2665 = vmatprep.mubr.bf16.mxu0 0
        %2666 = vmatmul.mubr.bf16.gmra.mxu0 %v1748
        %v2667 = vpop.f32.mrf.mxu0
        %v2668 = vadd.f32 0.0, %v2667
        %v2669 = vpop.f32.mrf.mxu0
        %v2670 = vpop.f32.mrf.mxu0
        %v2671 = vadd.f32 0.0, %v2670
        %v2672 = vpop.f32.mrf.mxu0
        %2673 = vmatprep.mubr.bf16.mxu0 0
        %2674 = vmatmul.mubr.bf16.gmra.mxu0 %v1749
        %v2675 = vpop.f32.mrf.mxu0
        %v2676 = vadd.f32 0.0, %v2675
        %v2677 = vpop.f32.mrf.mxu0
        %v2678 = vpop.f32.mrf.mxu0
        %v2679 = vadd.f32 0.0, %v2678
        %v2680 = vpop.f32.mrf.mxu0
        %2681 = vdwg.mxu0
        %v2682 = vadd.f32 %v2425, %v2556
        %v2683 = vadd.f32 %v2426, %v2559
        %v2684 = vadd.f32 %v2427, %v2564
        %v2685 = vadd.f32 %v2428, %v2567
        %v2686 = vadd.f32 %v2429, %v2572
        %v2687 = vadd.f32 %v2430, %v2575
        %v2688 = vadd.f32 %v2431, %v2580
        %v2689 = vadd.f32 %v2432, %v2583
        %v2690 = vadd.f32 %v2433, %v2588
        %v2691 = vadd.f32 %v2434, %v2591
        %v2692 = vadd.f32 %v2435, %v2596
        %v2693 = vadd.f32 %v2436, %v2599
        %v2694 = vadd.f32 %v2437, %v2604
        %v2695 = vadd.f32 %v2438, %v2607
        %v2696 = vadd.f32 %v2439, %v2612
        %v2697 = vadd.f32 %v2440, %v2615
        %v2698 = vadd.f32 %v2441, %v2620
        %v2699 = vadd.f32 %v2442, %v2623
        %v2700 = vadd.f32 %v2443, %v2628
        %v2701 = vadd.f32 %v2444, %v2631
        %v2702 = vadd.f32 %v2445, %v2636
        %v2703 = vadd.f32 %v2446, %v2639
        %v2704 = vadd.f32 %v2447, %v2644
        %v2705 = vadd.f32 %v2448, %v2647
        %v2706 = vadd.f32 %v2449, %v2652
        %v2707 = vadd.f32 %v2450, %v2655
        %v2708 = vadd.f32 %v2451, %v2660
        %v2709 = vadd.f32 %v2452, %v2663
        %v2710 = vadd.f32 %v2453, %v2668
        %v2711 = vadd.f32 %v2454, %v2671
        %v2712 = vadd.f32 %v2455, %v2676
        %v2713 = vadd.f32 %v2456, %v2679
        %2714 = vst [vmem:[%s164] sm:$0xff] %v2682
        %2715 = vst [vmem:[%s164 + $0x8] sm:$0xff] %v2683
        %2716 = vst [vmem:[%s164 + $0x10] sm:$0xff] %v2684
        %2717 = vst [vmem:[%s164 + $0x18] sm:$0xff] %v2685
        %2718 = vst [vmem:[%s164 + $0x20] sm:$0xff] %v2686
        %2719 = vst [vmem:[%s164 + $0x28] sm:$0xff] %v2687
        %2720 = vst [vmem:[%s164 + $0x30] sm:$0xff] %v2688
        %2721 = vst [vmem:[%s164 + $0x38] sm:$0xff] %v2689
        %2722 = vst [vmem:[%s164 + $0x40] sm:$0xff] %v2690
        %2723 = vst [vmem:[%s164 + $0x48] sm:$0xff] %v2691
        %2724 = vst [vmem:[%s164 + $0x50] sm:$0xff] %v2692
        %2725 = vst [vmem:[%s164 + $0x58] sm:$0xff] %v2693
        %2726 = vst [vmem:[%s164 + $0x60] sm:$0xff] %v2694
        %2727 = vst [vmem:[%s164 + $0x68] sm:$0xff] %v2695
        %2728 = vst [vmem:[%s164 + $0x70] sm:$0xff] %v2696
        %2729 = vst [vmem:[%s164 + $0x78] sm:$0xff] %v2697
        %2730 = vst [vmem:[%s164 + $0x80] sm:$0xff] %v2698
        %2731 = vst [vmem:[%s164 + $0x88] sm:$0xff] %v2699
        %2732 = vst [vmem:[%s164 + $0x90] sm:$0xff] %v2700
        %2733 = vst [vmem:[%s164 + $0x98] sm:$0xff] %v2701
        %2734 = vst [vmem:[%s164 + $0xa0] sm:$0xff] %v2702
        %2735 = vst [vmem:[%s164 + $0xa8] sm:$0xff] %v2703
        %2736 = vst [vmem:[%s164 + $0xb0] sm:$0xff] %v2704
        %2737 = vst [vmem:[%s164 + $0xb8] sm:$0xff] %v2705
        %2738 = vst [vmem:[%s164 + $0xc0] sm:$0xff] %v2706
        %2739 = vst [vmem:[%s164 + $0xc8] sm:$0xff] %v2707
        %2740 = vst [vmem:[%s164 + $0xd0] sm:$0xff] %v2708
        %2741 = vst [vmem:[%s164 + $0xd8] sm:$0xff] %v2709
        %2742 = vst [vmem:[%s164 + $0xe0] sm:$0xff] %v2710
        %2743 = vst [vmem:[%s164 + $0xe8] sm:$0xff] %v2711
        %2744 = vst [vmem:[%s164 + $0xf0] sm:$0xff] %v2712
        %2745 = vst [vmem:[%s164 + $0xf8] sm:$0xff] %v2713
        %s2746 = sand.u32 %s93, 1
        %s2747 = scalar_lea.sflag [#allocation3], %s2746
        %s2748 = sand.u32 %s93, 1
        %s2749 = smul.addr %s2748, 256
        %s2750 = scalar_lea.vmem [#allocation2], %s2749
        // Predicated region
        $region33: #{tpu_custom_call.1} parent=31 // pred_check
          %p2751 = pneg %p103
        $region34: #{tpu_custom_call.1} parent=31 // pred_check_branch
          %2753 = sbr.rel (%p2751) target = $region36
        $region35: #{tpu_custom_call.1} parent=31 // pred_region
          %s2754 = smul.u32 32, %s17
          %s2756 = ssub.s32 4096, 4096
          %2757 = vsyncadd %s2747, %s2756
          %s2758 = smul.addr %s2754, 128
          %s2759 = scalar_lea.hbm %s3, %s2758
          %s2760 = sshll.u32 %s2750, 4
          %s2761 = int_to_ptr.vmem [resolvable:$true] %s2760
          %2766 = dma.vmem_to_hbm [thread:$0]  %s2761, 4096, %s2759, %s2747, 128, 128, 8
        $region36: #{tpu_custom_call.1} parent=31 // pred_fallthru
          _
      $region32: #{tpu_custom_call.1} parent=5 // pred_fallthru
        _
      %p2767 = scmp.le.s32.totalorder 2, %s12
      // Predicated region
      $region37: #{tpu_custom_call.1} parent=5 // pred_check
        %p2768 = pneg %p2767
      $region38: #{tpu_custom_call.1} parent=5 // pred_check_branch
        %2770 = sbr.rel (%p2768) target = $region40
      $region39: #{tpu_custom_call.1} parent=5 // pred_region
        %s2771 = ssub.s32 %s12, 2
        // Predicated region
        $region41: #{tpu_custom_call.1} parent=39 // pred_check
          %p2772 = pneg %p109
        $region42: #{tpu_custom_call.1} parent=39 // pred_check_branch
          %2774 = sbr.rel (%p2772) target = $region44
        $region43: #{tpu_custom_call.1} parent=39 // pred_region
          %s2775 = sand.u32 %s94, 1
          %s2776 = scalar_lea.sflag [#allocation3], %s2775
          %s2777 = sand.u32 %s94, 1
          %s2778 = smul.addr %s2777, 256
          %s2779 = scalar_lea.vmem [#allocation2], %s2778
          %2780 = dma.done %s2776, 4096
        $region44: #{tpu_custom_call.1} parent=39 // pred_fallthru
          _
      $region40: #{tpu_custom_call.1} parent=5 // pred_fallthru
        _
    $region6: #{tpu_custom_call.1} parent=1 // loop_footer
      %s16 = sadd.s32 1, %s12
    $region7: #{tpu_custom_call.1} parent=1 // loop_footer_branch
      %11 = sbr.rel target = $region3
    $region8: #{tpu_custom_call.1} parent=1 // loop_exit
      _
    %2781 = vsyncpa [#allocation3], 1
    %s2782 = scalar_lea.sflag [#allocation3], 1
    %2783 = vsyncpa %s2782, 1

</llo_original>
